<compile_context>
chip_gen: v6e
topology: v6e:2x2x1
jax: 0.10.0
libtpu: 0.0.40
codegen_flags: <defaults>
</compile_context>

<pallas_src>
import jax
import jax.numpy as jnp
from jax.experimental import pallas as pl
from jax.experimental.pallas import tpu as pltpu

IN_DIM = 1024
HID_DIM = 768
OUT_DIM = 768


def _pooler_kernel(x_ref, w_ref, b_ref, o_ref):
    x = x_ref[...]
    if x.dtype != jnp.bfloat16:          # trace-time branch; bf16 input skips it
        x = x.astype(jnp.bfloat16)
    # bf16 operands on the MXU, f32 accumulation.
    y = jnp.dot(x, w_ref[...], preferred_element_type=jnp.float32)
    y = y + b_ref[...]                   # f32 bias add (VPU)
    o_ref[...] = jnp.tanh(y).astype(o_ref.dtype)   # tanh on EUP, hidden under HBM


def _round_up(a, b):
    return (a + b - 1) // b * b


def _pick_row_tile(M, tm):
    # Small batch: one tile exactly covering it (block == full dim is legal).
    if M <= 256:
        return M
    # Otherwise: multiples of 128 (bf16 sublane packing / MXU alignment) and
    # at least 2 row tiles so both v7x TensorCores get work.
    half = _round_up((M + 1) // 2, 128)
    return max(128, min(tm, half))


def fuse_pooler_params(w1, b1, w2, b2):
    """Fold the two affine layers into one (call once, reuse the result).

    w1: (1024, 768), w2: (768, 768) are the nn.Linear weights stored
    transposed as (in_features, out_features); b1, b2 are (768,)."""
    w1f = w1.astype(jnp.float32)
    w2f = w2.astype(jnp.float32)
    w_fused = (w1f @ w2f).astype(jnp.bfloat16)                        # (1024, 768)
    b_fused = (b1.astype(jnp.float32) @ w2f + b2.astype(jnp.float32))
    b_fused = b_fused.reshape(1, OUT_DIM).astype(jnp.float32)         # (1, 768)
    return w_fused, b_fused


def pooler_forward(x, w_fused, b_fused, *, tm=512, out_dtype=jnp.bfloat16):
    """x: (M, 1024), ideally bf16. w_fused/b_fused from fuse_pooler_params."""
    M, K = x.shape
    assert K == IN_DIM

    tm_eff = _pick_row_tile(M, tm)
    grid = (pl.cdiv(M, tm_eff),)         # ragged tail handled by partial tiles

    out_itemsize = jnp.dtype(out_dtype).itemsize
    cost = pl.CostEstimate(
        flops=2 * M * IN_DIM * OUT_DIM,
        transcendentals=M * OUT_DIM,
        bytes_accessed=(M * IN_DIM * x.dtype.itemsize
                        + IN_DIM * OUT_DIM * 2      # bf16 fused weight
                        + OUT_DIM * 4               # f32 fused bias
                        + M * OUT_DIM * out_itemsize),
    )

    return pl.pallas_call(
        _pooler_kernel,
        out_shape=jax.ShapeDtypeStruct((M, OUT_DIM), out_dtype),
        grid_spec=pltpu.PrefetchScalarGridSpec(
            num_scalar_prefetch=0,
            grid=grid,
            in_specs=[
                pl.BlockSpec((tm_eff, IN_DIM), lambda i: (i, 0)),    # x row tile
                pl.BlockSpec((IN_DIM, OUT_DIM), lambda i: (0, 0)),   # fused W (grid-invariant)
                pl.BlockSpec((1, OUT_DIM), lambda i: (0, 0)),        # fused bias
            ],
            out_specs=pl.BlockSpec((tm_eff, OUT_DIM), lambda i: (i, 0)),
        ),
        compiler_params=pltpu.CompilerParams(
            dimension_semantics=("parallel",),   # row tiles shard across TCs (v7x)
        ),
        cost_estimate=cost,
    )(x, w_fused, b_fused)


def pooler_reference(x, w1, b1, w2, b2):
    # Unfused f32 reference matching the PyTorch module exactly.
    h = x @ w1 + b1
    y = h @ w2 + b2
    return jnp.tanh(y)


if __name__ == "__main__":
    key = jax.random.PRNGKey(0)
    k_x, k_w1, k_b1, k_w2, k_b2 = jax.random.split(key, 5)

    # Deterministic "synthetic checkpoint" parameters (nn.Linear weights stored
    # transposed as (in_features, out_features)).
    w1 = jax.random.normal(k_w1, (IN_DIM, HID_DIM), dtype=jnp.float32) * 0.02
    b1 = jax.random.normal(k_b1, (HID_DIM,), dtype=jnp.float32) * 0.02
    w2 = jax.random.normal(k_w2, (HID_DIM, OUT_DIM), dtype=jnp.float32) * 0.02
    b2 = jax.random.normal(k_b2, (OUT_DIM,), dtype=jnp.float32) * 0.02

    # Fuse once (hoisted out of the per-call path).
    w_fused, b_fused = fuse_pooler_params(w1, b1, w2, b2)
    w_fused, b_fused = jax.block_until_ready((w_fused, b_fused))

    # Two batch sizes: a small single-tile batch and a ragged multi-tile batch.
    for M in (72, 300):
        x_f32 = jax.random.normal(k_x, (M, IN_DIM), dtype=jnp.float32)
        x = x_f32.astype(jnp.bfloat16)           # bf16 activations end-to-end

        out = pooler_forward(x, w_fused, b_fused)
        out = jax.block_until_ready(out)
        assert out.shape == (M, OUT_DIM)
        assert out.dtype == jnp.bfloat16

        # Reference on the same (bf16-quantized) input, in f32.
        ref = pooler_reference(x.astype(jnp.float32), w1, b1, w2, b2)
        # bf16 matmul operands + exact layer fusion + bf16 output rounding:
        # observed error ~1e-3 level; tolerance 2e-2.
        assert jnp.allclose(out.astype(jnp.float32), ref, atol=2e-2, rtol=2e-2), \
            f"mismatch vs reference for M={M}"

    print("KERNEL_OK")
</pallas_src>

<mosaic_0001>
module attributes {stable_mosaic.version = 11 : i64} {
  func.func @_pooler_kernel(%arg0: i32, %arg1: memref<72x1024xbf16, #tpu.memory_space<vmem>>, %arg2: memref<1024x768xbf16, #tpu.memory_space<vmem>>, %arg3: memref<1x768xf32, #tpu.memory_space<vmem>>, %arg4: memref<72x768xbf16, #tpu.memory_space<vmem>>) attributes {dimension_semantics = [#tpu.dimension_semantics<parallel>], iteration_bounds = array<i64: 1>, scalar_prefetch = 0 : i64, scratch_operands = 0 : i64, tpu.core_type = #tpu.core_type<tc>, window_params = [{transform_indices = @transform_0, window_bounds = array<i64: 72, 1024>}, {pipeline_mode = #tpu.pipeline_mode<synchronous>, transform_indices = @transform_1, window_bounds = array<i64: 1024, 768>}, {pipeline_mode = #tpu.pipeline_mode<synchronous>, transform_indices = @transform_2, window_bounds = array<i64: 1, 768>}, {transform_indices = @transform_3, window_bounds = array<i64: 72, 768>}]} {
    %c0 = arith.constant 0 : index
    %c0_0 = arith.constant 0 : index
    %0 = vector.load %arg1[%c0, %c0_0] : memref<72x1024xbf16, #tpu.memory_space<vmem>>, vector<72x1024xbf16>
    %c0_1 = arith.constant 0 : index
    %c0_2 = arith.constant 0 : index
    %1 = vector.load %arg2[%c0_1, %c0_2] : memref<1024x768xbf16, #tpu.memory_space<vmem>>, vector<1024x768xbf16>
    %cst = arith.constant dense<0.000000e+00> : vector<72x768xf32>
    %2 = tpu.matmul %0, %1, %cst {dimension_numbers = #tpu.dot_dimension_numbers<[1], [0], [0], [1], [0, 0, 1, 1], [], []>} : vector<72x1024xbf16>, vector<1024x768xbf16>, vector<72x768xf32> -> vector<72x768xf32>
    %c0_3 = arith.constant 0 : index
    %c0_4 = arith.constant 0 : index
    %3 = vector.load %arg3[%c0_3, %c0_4] : memref<1x768xf32, #tpu.memory_space<vmem>>, vector<1x768xf32>
    %4 = vector.broadcast %3 : vector<1x768xf32> to vector<72x768xf32>
    %5 = arith.addf %2, %4 : vector<72x768xf32>
    %6 = math.tanh %5 : vector<72x768xf32>
    %7 = arith.truncf %6 : vector<72x768xf32> to vector<72x768xbf16>
    %c0_5 = arith.constant 0 : index
    %c0_6 = arith.constant 0 : index
    %8 = vector.load %arg4[%c0_5, %c0_6] : memref<72x768xbf16, #tpu.memory_space<vmem>>, vector<72x768xbf16>
    tpu.vector_store %arg4[%c0_5, %c0_6], %7 {strides = array<i32>} : memref<72x768xbf16, #tpu.memory_space<vmem>>, vector<72x768xbf16>,
    return
  }
  func.func @transform_0(%arg0: i32) -> (i32, i32) {
    %c0_i32 = arith.constant 0 : i32
    %c0_i32_0 = arith.constant 0 : i32
    return %arg0, %c0_i32 : i32, i32
  }
  func.func @transform_1(%arg0: i32) -> (i32, i32) {
    %c0_i32 = arith.constant 0 : i32
    %c0_i32_0 = arith.constant 0 : i32
    %c0_i32_1 = arith.constant 0 : i32
    return %c0_i32, %c0_i32_0 : i32, i32
  }
  func.func @transform_2(%arg0: i32) -> (i32, i32) {
    %c0_i32 = arith.constant 0 : i32
    %c0_i32_0 = arith.constant 0 : i32
    %c0_i32_1 = arith.constant 0 : i32
    return %c0_i32, %c0_i32_0 : i32, i32
  }
  func.func @transform_3(%arg0: i32) -> (i32, i32) {
    %c0_i32 = arith.constant 0 : i32
    %c0_i32_0 = arith.constant 0 : i32
    return %arg0, %c0_i32 : i32, i32
  }
}

</mosaic_0001>

<llo_original>
// kernel: tpu_custom_call.1
$region0: #{tpu_custom_call.1}
  #allocation0 [shape = 'u32[]', space=smem, size = 0x4, offset = 0x4, fixed_abs, tag = 'smem constant byte address 0x4 - core index']
  #allocation1 [shape = 'u32[144,128]{1,0:T(1,128)}', space=vmem, size = 0x12000, scoped, tag = 'internal scratch']
  %s0 = inlined_call_operand.hbm [shape: bf16[72,1024], index: 0, kind: input, shape index: {}]
  %s1 = inlined_call_operand.hbm [shape: bf16[1024,768], index: 1, kind: input, shape index: {}]
  %s2 = inlined_call_operand.hbm [shape: f32[1,768], index: 2, kind: input, shape index: {}]
  %s3 = inlined_call_operand.hbm [shape: bf16[72,768], index: 3, kind: output, shape index: {}]
  %s4 = sld [smem:[#allocation0]]
  $region34: #{tpu_custom_call.1} parent=0
    _
  %s6 = ssub.s32 1, %s4
  %s7 = scalar_select 0, %s6, %s4
  $region1: #{tpu_custom_call.1} parent=0
    #allocation2 [shape = 'u8[147456]{0}', space=vmem, size = 0x24000, scoped, tag = 'input window, operand 0, single buffered']
    #allocation3 [shape = 's32[1]{0}', space=sflag, size = 0x4, scoped, tag = 'scoped memory for tpu_custom_call.1']
    #allocation4 [shape = 's32[1]{0}', space=sflag, size = 0x4, scoped, tag = 'scoped memory for tpu_custom_call.1']
    #allocation5 [shape = 'u8[1572864]{0}', space=vmem, size = 0x180000, scoped, tag = 'input window, operand 1, single buffered']
    #allocation6 [shape = 's32[1]{0}', space=sflag, size = 0x4, scoped, tag = 'scoped memory for tpu_custom_call.1']
    #allocation7 [shape = 'u8[3072]{0}', space=vmem, size = 0xc00, scoped, tag = 'input window, operand 2, single buffered']
    #allocation8 [shape = 'u8[110592]{0}', space=vmem, size = 0x1b000, scoped, tag = 'output window, operand 0, single buffered']
    %8 = vsyncpa [#allocation3], 0
    %9 = vsyncpa [#allocation6], 0
    %10 = vsyncpa [#allocation4], 0
    // Predicated region
    $region2: #{tpu_custom_call.1} parent=1 // pred_check
      _
    $region3: #{tpu_custom_call.1} parent=1 // pred_check_branch
      %12 = sbr.rel (0) target = $region5
    $region4: #{tpu_custom_call.1} parent=1 // pred_region
      %s14 = ssub.s32 4608, 4608
      %15 = vsyncadd [#allocation3], %s14
      %s16 = sshll.u32 [#allocation2], 4
      %s17 = int_to_ptr.vmem [resolvable:$true] %s16
      %22 = dma.hbm_to_vmem [thread:$0]  %s0, 4608, %s17, [#allocation3], 512, 512, 32
    $region5: #{tpu_custom_call.1} parent=1 // pred_fallthru
      _
    // Predicated region
    $region6: #{tpu_custom_call.1} parent=1 // pred_check
      _
    $region7: #{tpu_custom_call.1} parent=1 // pred_check_branch
      %24 = sbr.rel (0) target = $region9
    $region8: #{tpu_custom_call.1} parent=1 // pred_region
      %s26 = ssub.s32 49152, 49152
      %27 = vsyncadd [#allocation6], %s26
      %s28 = sshll.u32 [#allocation5], 4
      %s29 = int_to_ptr.vmem [resolvable:$true] %s28
      %34 = dma.hbm_to_vmem [thread:$0]  %s1, 49152, %s29, [#allocation6], 384, 384, 24
    $region9: #{tpu_custom_call.1} parent=1 // pred_fallthru
      _
    // Predicated region
    $region10: #{tpu_custom_call.1} parent=1 // pred_check
      _
    $region11: #{tpu_custom_call.1} parent=1 // pred_check_branch
      %36 = sbr.rel (0) target = $region13
    $region12: #{tpu_custom_call.1} parent=1 // pred_region
      %s38 = ssub.s32 96, 96
      %39 = vsyncadd [#allocation6], %s38
      %s41 = sshll.u32 [#allocation7], 4
      %s42 = int_to_ptr.vmem [resolvable:$true] %s41
      %44 = dma.hbm_to_vmem [thread:$0]  %s2, 96, %s42, [#allocation6]
    $region13: #{tpu_custom_call.1} parent=1 // pred_fallthru
      _
    // Predicated region
    $region14: #{tpu_custom_call.1} parent=1 // pred_check
      _
    $region15: #{tpu_custom_call.1} parent=1 // pred_check_branch
      %46 = sbr.rel (0) target = $region17
    $region16: #{tpu_custom_call.1} parent=1 // pred_region
      %47 = dma.done [#allocation3], 4608
    $region17: #{tpu_custom_call.1} parent=1 // pred_fallthru
      _
    // Predicated region
    $region18: #{tpu_custom_call.1} parent=1 // pred_check
      _
    $region19: #{tpu_custom_call.1} parent=1 // pred_check_branch
      %49 = sbr.rel (0) target = $region21
    $region20: #{tpu_custom_call.1} parent=1 // pred_region
      %50 = dma.done [#allocation6], 49152
    $region21: #{tpu_custom_call.1} parent=1 // pred_fallthru
      _
    // Predicated region
    $region22: #{tpu_custom_call.1} parent=1 // pred_check
      _
    $region23: #{tpu_custom_call.1} parent=1 // pred_check_branch
      %52 = sbr.rel (0) target = $region25
    $region24: #{tpu_custom_call.1} parent=1 // pred_region
      %53 = dma.done [#allocation6], 96
    $region25: #{tpu_custom_call.1} parent=1 // pred_fallthru
      _
    %v54 = vld [vmem:[#allocation2] sm:$0xff]
    %v55 = vld [vmem:[#allocation2 + $0x8] sm:$0xff]
    %v56 = vld [vmem:[#allocation2 + $0x10] sm:$0xff]
    %v57 = vld [vmem:[#allocation2 + $0x18] sm:$0xff]
    %v58 = vld [vmem:[#allocation2 + $0x20] sm:$0xff]
    %v59 = vld [vmem:[#allocation2 + $0x28] sm:$0xff]
    %v60 = vld [vmem:[#allocation2 + $0x30] sm:$0xff]
    %v61 = vld [vmem:[#allocation2 + $0x38] sm:$0xff]
    %v62 = vld [vmem:[#allocation2 + $0x40] sm:$0xff]
    %v63 = vld [vmem:[#allocation2 + $0x48] sm:$0xff]
    %v64 = vld [vmem:[#allocation2 + $0x50] sm:$0xff]
    %v65 = vld [vmem:[#allocation2 + $0x58] sm:$0xff]
    %v66 = vld [vmem:[#allocation2 + $0x60] sm:$0xff]
    %v67 = vld [vmem:[#allocation2 + $0x68] sm:$0xff]
    %v68 = vld [vmem:[#allocation2 + $0x70] sm:$0xff]
    %v69 = vld [vmem:[#allocation2 + $0x78] sm:$0xff]
    %v70 = vld [vmem:[#allocation2 + $0x80] sm:$0xff]
    %v71 = vld [vmem:[#allocation2 + $0x88] sm:$0xff]
    %v72 = vld [vmem:[#allocation2 + $0x90] sm:$0xff]
    %v73 = vld [vmem:[#allocation2 + $0x98] sm:$0xff]
    %v74 = vld [vmem:[#allocation2 + $0xa0] sm:$0xff]
    %v75 = vld [vmem:[#allocation2 + $0xa8] sm:$0xff]
    %v76 = vld [vmem:[#allocation2 + $0xb0] sm:$0xff]
    %v77 = vld [vmem:[#allocation2 + $0xb8] sm:$0xff]
    %v78 = vld [vmem:[#allocation2 + $0xc0] sm:$0xff]
    %v79 = vld [vmem:[#allocation2 + $0xc8] sm:$0xff]
    %v80 = vld [vmem:[#allocation2 + $0xd0] sm:$0xff]
    %v81 = vld [vmem:[#allocation2 + $0xd8] sm:$0xff]
    %v82 = vld [vmem:[#allocation2 + $0xe0] sm:$0xff]
    %v83 = vld [vmem:[#allocation2 + $0xe8] sm:$0xff]
    %v84 = vld [vmem:[#allocation2 + $0xf0] sm:$0xff]
    %v85 = vld [vmem:[#allocation2 + $0xf8] sm:$0xff]
    %v86 = vld [vmem:[#allocation2 + $0x100] sm:$0xff]
    %v87 = vld [vmem:[#allocation2 + $0x108] sm:$0xff]
    %v88 = vld [vmem:[#allocation2 + $0x110] sm:$0xff]
    %v89 = vld [vmem:[#allocation2 + $0x118] sm:$0xff]
    %v90 = vld [vmem:[#allocation5] sm:$0xff]
    %v91 = vld [vmem:[#allocation5 + $0x8] sm:$0xff]
    %v92 = vld [vmem:[#allocation5 + $0x10] sm:$0xff]
    %v93 = vld [vmem:[#allocation5 + $0x18] sm:$0xff]
    %v94 = vld [vmem:[#allocation5 + $0x20] sm:$0xff]
    %v95 = vld [vmem:[#allocation5 + $0x28] sm:$0xff]
    %v96 = vld [vmem:[#allocation5 + $0x30] sm:$0xff]
    %v97 = vld [vmem:[#allocation5 + $0x38] sm:$0xff]
    %v98 = vld [vmem:[#allocation5 + $0x40] sm:$0xff]
    %v99 = vld [vmem:[#allocation5 + $0x48] sm:$0xff]
    %v100 = vld [vmem:[#allocation5 + $0x50] sm:$0xff]
    %v101 = vld [vmem:[#allocation5 + $0x58] sm:$0xff]
    %v102 = vld [vmem:[#allocation5 + $0x60] sm:$0xff]
    %v103 = vld [vmem:[#allocation5 + $0x68] sm:$0xff]
    %v104 = vld [vmem:[#allocation5 + $0x70] sm:$0xff]
    %v105 = vld [vmem:[#allocation5 + $0x78] sm:$0xff]
    %v106 = vld [vmem:[#allocation5 + $0x80] sm:$0xff]
    %v107 = vld [vmem:[#allocation5 + $0x88] sm:$0xff]
    %v108 = vld [vmem:[#allocation5 + $0x90] sm:$0xff]
    %v109 = vld [vmem:[#allocation5 + $0x98] sm:$0xff]
    %v110 = vld [vmem:[#allocation5 + $0xa0] sm:$0xff]
    %v111 = vld [vmem:[#allocation5 + $0xa8] sm:$0xff]
    %v112 = vld [vmem:[#allocation5 + $0xb0] sm:$0xff]
    %v113 = vld [vmem:[#allocation5 + $0xb8] sm:$0xff]
    %v114 = vld [vmem:[#allocation5 + $0xc0] sm:$0xff]
    %v115 = vld [vmem:[#allocation5 + $0xc8] sm:$0xff]
    %v116 = vld [vmem:[#allocation5 + $0xd0] sm:$0xff]
    %v117 = vld [vmem:[#allocation5 + $0xd8] sm:$0xff]
    %v118 = vld [vmem:[#allocation5 + $0xe0] sm:$0xff]
    %v119 = vld [vmem:[#allocation5 + $0xe8] sm:$0xff]
    %v120 = vld [vmem:[#allocation5 + $0xf0] sm:$0xff]
    %v121 = vld [vmem:[#allocation5 + $0xf8] sm:$0xff]
    %v122 = vld [vmem:[#allocation5 + $0x100] sm:$0xff]
    %v123 = vld [vmem:[#allocation5 + $0x108] sm:$0xff]
    %v124 = vld [vmem:[#allocation5 + $0x110] sm:$0xff]
    %v125 = vld [vmem:[#allocation5 + $0x118] sm:$0xff]
    %v126 = vld [vmem:[#allocation5 + $0x120] sm:$0xff]
    %v127 = vld [vmem:[#allocation5 + $0x128] sm:$0xff]
    %v128 = vld [vmem:[#allocation5 + $0x130] sm:$0xff]
    %v129 = vld [vmem:[#allocation5 + $0x138] sm:$0xff]
    %v130 = vld [vmem:[#allocation5 + $0x140] sm:$0xff]
    %v131 = vld [vmem:[#allocation5 + $0x148] sm:$0xff]
    %v132 = vld [vmem:[#allocation5 + $0x150] sm:$0xff]
    %v133 = vld [vmem:[#allocation5 + $0x158] sm:$0xff]
    %v134 = vld [vmem:[#allocation5 + $0x160] sm:$0xff]
    %v135 = vld [vmem:[#allocation5 + $0x168] sm:$0xff]
    %v136 = vld [vmem:[#allocation5 + $0x170] sm:$0xff]
    %v137 = vld [vmem:[#allocation5 + $0x178] sm:$0xff]
    %v138 = vld [vmem:[#allocation5 + $0x180] sm:$0xff]
    %v139 = vld [vmem:[#allocation5 + $0x188] sm:$0xff]
    %v140 = vld [vmem:[#allocation5 + $0x190] sm:$0xff]
    %v141 = vld [vmem:[#allocation5 + $0x198] sm:$0xff]
    %v142 = vld [vmem:[#allocation5 + $0x1a0] sm:$0xff]
    %v143 = vld [vmem:[#allocation5 + $0x1a8] sm:$0xff]
    %v144 = vld [vmem:[#allocation5 + $0x1b0] sm:$0xff]
    %v145 = vld [vmem:[#allocation5 + $0x1b8] sm:$0xff]
    %v146 = vld [vmem:[#allocation5 + $0x1c0] sm:$0xff]
    %v147 = vld [vmem:[#allocation5 + $0x1c8] sm:$0xff]
    %v148 = vld [vmem:[#allocation5 + $0x1d0] sm:$0xff]
    %v149 = vld [vmem:[#allocation5 + $0x1d8] sm:$0xff]
    %v150 = vld [vmem:[#allocation5 + $0x1e0] sm:$0xff]
    %v151 = vld [vmem:[#allocation5 + $0x1e8] sm:$0xff]
    %v152 = vld [vmem:[#allocation5 + $0x1f0] sm:$0xff]
    %v153 = vld [vmem:[#allocation5 + $0x1f8] sm:$0xff]
    %v154 = vld [vmem:[#allocation5 + $0x200] sm:$0xff]
    %v155 = vld [vmem:[#allocation5 + $0x208] sm:$0xff]
    %v156 = vld [vmem:[#allocation5 + $0x210] sm:$0xff]
    %v157 = vld [vmem:[#allocation5 + $0x218] sm:$0xff]
    %v158 = vld [vmem:[#allocation5 + $0x220] sm:$0xff]
    %v159 = vld [vmem:[#allocation5 + $0x228] sm:$0xff]
    %v160 = vld [vmem:[#allocation5 + $0x230] sm:$0xff]
    %v161 = vld [vmem:[#allocation5 + $0x238] sm:$0xff]
    %v162 = vld [vmem:[#allocation5 + $0x240] sm:$0xff]
    %v163 = vld [vmem:[#allocation5 + $0x248] sm:$0xff]
    %v164 = vld [vmem:[#allocation5 + $0x250] sm:$0xff]
    %v165 = vld [vmem:[#allocation5 + $0x258] sm:$0xff]
    %v166 = vld [vmem:[#allocation5 + $0x260] sm:$0xff]
    %v167 = vld [vmem:[#allocation5 + $0x268] sm:$0xff]
    %v168 = vld [vmem:[#allocation5 + $0x270] sm:$0xff]
    %v169 = vld [vmem:[#allocation5 + $0x278] sm:$0xff]
    %v170 = vld [vmem:[#allocation5 + $0x280] sm:$0xff]
    %v171 = vld [vmem:[#allocation5 + $0x288] sm:$0xff]
    %v172 = vld [vmem:[#allocation5 + $0x290] sm:$0xff]
    %v173 = vld [vmem:[#allocation5 + $0x298] sm:$0xff]
    %v174 = vld [vmem:[#allocation5 + $0x2a0] sm:$0xff]
    %v175 = vld [vmem:[#allocation5 + $0x2a8] sm:$0xff]
    %v176 = vld [vmem:[#allocation5 + $0x2b0] sm:$0xff]
    %v177 = vld [vmem:[#allocation5 + $0x2b8] sm:$0xff]
    %v178 = vld [vmem:[#allocation5 + $0x2c0] sm:$0xff]
    %v179 = vld [vmem:[#allocation5 + $0x2c8] sm:$0xff]
    %v180 = vld [vmem:[#allocation5 + $0x2d0] sm:$0xff]
    %v181 = vld [vmem:[#allocation5 + $0x2d8] sm:$0xff]
    %v182 = vld [vmem:[#allocation5 + $0x2e0] sm:$0xff]
    %v183 = vld [vmem:[#allocation5 + $0x2e8] sm:$0xff]
    %v184 = vld [vmem:[#allocation5 + $0x2f0] sm:$0xff]
    %v185 = vld [vmem:[#allocation5 + $0x2f8] sm:$0xff]
    %v186 = vld [vmem:[#allocation5 + $0x300] sm:$0xff]
    %v187 = vld [vmem:[#allocation5 + $0x308] sm:$0xff]
    %v188 = vld [vmem:[#allocation5 + $0x310] sm:$0xff]
    %v189 = vld [vmem:[#allocation5 + $0x318] sm:$0xff]
    %v190 = vld [vmem:[#allocation5 + $0x320] sm:$0xff]
    %v191 = vld [vmem:[#allocation5 + $0x328] sm:$0xff]
    %v192 = vld [vmem:[#allocation5 + $0x330] sm:$0xff]
    %v193 = vld [vmem:[#allocation5 + $0x338] sm:$0xff]
    %v194 = vld [vmem:[#allocation5 + $0x340] sm:$0xff]
    %v195 = vld [vmem:[#allocation5 + $0x348] sm:$0xff]
    %v196 = vld [vmem:[#allocation5 + $0x350] sm:$0xff]
    %v197 = vld [vmem:[#allocation5 + $0x358] sm:$0xff]
    %v198 = vld [vmem:[#allocation5 + $0x360] sm:$0xff]
    %v199 = vld [vmem:[#allocation5 + $0x368] sm:$0xff]
    %v200 = vld [vmem:[#allocation5 + $0x370] sm:$0xff]
    %v201 = vld [vmem:[#allocation5 + $0x378] sm:$0xff]
    %v202 = vld [vmem:[#allocation5 + $0x380] sm:$0xff]
    %v203 = vld [vmem:[#allocation5 + $0x388] sm:$0xff]
    %v204 = vld [vmem:[#allocation5 + $0x390] sm:$0xff]
    %v205 = vld [vmem:[#allocation5 + $0x398] sm:$0xff]
    %v206 = vld [vmem:[#allocation5 + $0x3a0] sm:$0xff]
    %v207 = vld [vmem:[#allocation5 + $0x3a8] sm:$0xff]
    %v208 = vld [vmem:[#allocation5 + $0x3b0] sm:$0xff]
    %v209 = vld [vmem:[#allocation5 + $0x3b8] sm:$0xff]
    %v210 = vld [vmem:[#allocation5 + $0x3c0] sm:$0xff]
    %v211 = vld [vmem:[#allocation5 + $0x3c8] sm:$0xff]
    %v212 = vld [vmem:[#allocation5 + $0x3d0] sm:$0xff]
    %v213 = vld [vmem:[#allocation5 + $0x3d8] sm:$0xff]
    %v214 = vld [vmem:[#allocation5 + $0x3e0] sm:$0xff]
    %v215 = vld [vmem:[#allocation5 + $0x3e8] sm:$0xff]
    %v216 = vld [vmem:[#allocation5 + $0x3f0] sm:$0xff]
    %v217 = vld [vmem:[#allocation5 + $0x3f8] sm:$0xff]
    %v218 = vld [vmem:[#allocation5 + $0x400] sm:$0xff]
    %v219 = vld [vmem:[#allocation5 + $0x408] sm:$0xff]
    %v220 = vld [vmem:[#allocation5 + $0x410] sm:$0xff]
    %v221 = vld [vmem:[#allocation5 + $0x418] sm:$0xff]
    %v222 = vld [vmem:[#allocation5 + $0x420] sm:$0xff]
    %v223 = vld [vmem:[#allocation5 + $0x428] sm:$0xff]
    %v224 = vld [vmem:[#allocation5 + $0x430] sm:$0xff]
    %v225 = vld [vmem:[#allocation5 + $0x438] sm:$0xff]
    %v226 = vld [vmem:[#allocation5 + $0x440] sm:$0xff]
    %v227 = vld [vmem:[#allocation5 + $0x448] sm:$0xff]
    %v228 = vld [vmem:[#allocation5 + $0x450] sm:$0xff]
    %v229 = vld [vmem:[#allocation5 + $0x458] sm:$0xff]
    %v230 = vld [vmem:[#allocation5 + $0x460] sm:$0xff]
    %v231 = vld [vmem:[#allocation5 + $0x468] sm:$0xff]
    %v232 = vld [vmem:[#allocation5 + $0x470] sm:$0xff]
    %v233 = vld [vmem:[#allocation5 + $0x478] sm:$0xff]
    %v234 = vld [vmem:[#allocation5 + $0x480] sm:$0xff]
    %v235 = vld [vmem:[#allocation5 + $0x488] sm:$0xff]
    %v236 = vld [vmem:[#allocation5 + $0x490] sm:$0xff]
    %v237 = vld [vmem:[#allocation5 + $0x498] sm:$0xff]
    %v238 = vld [vmem:[#allocation5 + $0x4a0] sm:$0xff]
    %v239 = vld [vmem:[#allocation5 + $0x4a8] sm:$0xff]
    %v240 = vld [vmem:[#allocation5 + $0x4b0] sm:$0xff]
    %v241 = vld [vmem:[#allocation5 + $0x4b8] sm:$0xff]
    %v242 = vld [vmem:[#allocation5 + $0x4c0] sm:$0xff]
    %v243 = vld [vmem:[#allocation5 + $0x4c8] sm:$0xff]
    %v244 = vld [vmem:[#allocation5 + $0x4d0] sm:$0xff]
    %v245 = vld [vmem:[#allocation5 + $0x4d8] sm:$0xff]
    %v246 = vld [vmem:[#allocation5 + $0x4e0] sm:$0xff]
    %v247 = vld [vmem:[#allocation5 + $0x4e8] sm:$0xff]
    %v248 = vld [vmem:[#allocation5 + $0x4f0] sm:$0xff]
    %v249 = vld [vmem:[#allocation5 + $0x4f8] sm:$0xff]
    %v250 = vld [vmem:[#allocation5 + $0x500] sm:$0xff]
    %v251 = vld [vmem:[#allocation5 + $0x508] sm:$0xff]
    %v252 = vld [vmem:[#allocation5 + $0x510] sm:$0xff]
    %v253 = vld [vmem:[#allocation5 + $0x518] sm:$0xff]
    %v254 = vld [vmem:[#allocation5 + $0x520] sm:$0xff]
    %v255 = vld [vmem:[#allocation5 + $0x528] sm:$0xff]
    %v256 = vld [vmem:[#allocation5 + $0x530] sm:$0xff]
    %v257 = vld [vmem:[#allocation5 + $0x538] sm:$0xff]
    %v258 = vld [vmem:[#allocation5 + $0x540] sm:$0xff]
    %v259 = vld [vmem:[#allocation5 + $0x548] sm:$0xff]
    %v260 = vld [vmem:[#allocation5 + $0x550] sm:$0xff]
    %v261 = vld [vmem:[#allocation5 + $0x558] sm:$0xff]
    %v262 = vld [vmem:[#allocation5 + $0x560] sm:$0xff]
    %v263 = vld [vmem:[#allocation5 + $0x568] sm:$0xff]
    %v264 = vld [vmem:[#allocation5 + $0x570] sm:$0xff]
    %v265 = vld [vmem:[#allocation5 + $0x578] sm:$0xff]
    %v266 = vld [vmem:[#allocation5 + $0x580] sm:$0xff]
    %v267 = vld [vmem:[#allocation5 + $0x588] sm:$0xff]
    %v268 = vld [vmem:[#allocation5 + $0x590] sm:$0xff]
    %v269 = vld [vmem:[#allocation5 + $0x598] sm:$0xff]
    %v270 = vld [vmem:[#allocation5 + $0x5a0] sm:$0xff]
    %v271 = vld [vmem:[#allocation5 + $0x5a8] sm:$0xff]
    %v272 = vld [vmem:[#allocation5 + $0x5b0] sm:$0xff]
    %v273 = vld [vmem:[#allocation5 + $0x5b8] sm:$0xff]
    %v274 = vld [vmem:[#allocation5 + $0x5c0] sm:$0xff]
    %v275 = vld [vmem:[#allocation5 + $0x5c8] sm:$0xff]
    %v276 = vld [vmem:[#allocation5 + $0x5d0] sm:$0xff]
    %v277 = vld [vmem:[#allocation5 + $0x5d8] sm:$0xff]
    %v278 = vld [vmem:[#allocation5 + $0x5e0] sm:$0xff]
    %v279 = vld [vmem:[#allocation5 + $0x5e8] sm:$0xff]
    %v280 = vld [vmem:[#allocation5 + $0x5f0] sm:$0xff]
    %v281 = vld [vmem:[#allocation5 + $0x5f8] sm:$0xff]
    %v282 = vld [vmem:[#allocation5 + $0x600] sm:$0xff]
    %v283 = vld [vmem:[#allocation5 + $0x608] sm:$0xff]
    %v284 = vld [vmem:[#allocation5 + $0x610] sm:$0xff]
    %v285 = vld [vmem:[#allocation5 + $0x618] sm:$0xff]
    %v286 = vld [vmem:[#allocation5 + $0x620] sm:$0xff]
    %v287 = vld [vmem:[#allocation5 + $0x628] sm:$0xff]
    %v288 = vld [vmem:[#allocation5 + $0x630] sm:$0xff]
    %v289 = vld [vmem:[#allocation5 + $0x638] sm:$0xff]
    %v290 = vld [vmem:[#allocation5 + $0x640] sm:$0xff]
    %v291 = vld [vmem:[#allocation5 + $0x648] sm:$0xff]
    %v292 = vld [vmem:[#allocation5 + $0x650] sm:$0xff]
    %v293 = vld [vmem:[#allocation5 + $0x658] sm:$0xff]
    %v294 = vld [vmem:[#allocation5 + $0x660] sm:$0xff]
    %v295 = vld [vmem:[#allocation5 + $0x668] sm:$0xff]
    %v296 = vld [vmem:[#allocation5 + $0x670] sm:$0xff]
    %v297 = vld [vmem:[#allocation5 + $0x678] sm:$0xff]
    %v298 = vld [vmem:[#allocation5 + $0x680] sm:$0xff]
    %v299 = vld [vmem:[#allocation5 + $0x688] sm:$0xff]
    %v300 = vld [vmem:[#allocation5 + $0x690] sm:$0xff]
    %v301 = vld [vmem:[#allocation5 + $0x698] sm:$0xff]
    %v302 = vld [vmem:[#allocation5 + $0x6a0] sm:$0xff]
    %v303 = vld [vmem:[#allocation5 + $0x6a8] sm:$0xff]
    %v304 = vld [vmem:[#allocation5 + $0x6b0] sm:$0xff]
    %v305 = vld [vmem:[#allocation5 + $0x6b8] sm:$0xff]
    %v306 = vld [vmem:[#allocation5 + $0x6c0] sm:$0xff]
    %v307 = vld [vmem:[#allocation5 + $0x6c8] sm:$0xff]
    %v308 = vld [vmem:[#allocation5 + $0x6d0] sm:$0xff]
    %v309 = vld [vmem:[#allocation5 + $0x6d8] sm:$0xff]
    %v310 = vld [vmem:[#allocation5 + $0x6e0] sm:$0xff]
    %v311 = vld [vmem:[#allocation5 + $0x6e8] sm:$0xff]
    %v312 = vld [vmem:[#allocation5 + $0x6f0] sm:$0xff]
    %v313 = vld [vmem:[#allocation5 + $0x6f8] sm:$0xff]
    %v314 = vld [vmem:[#allocation5 + $0x700] sm:$0xff]
    %v315 = vld [vmem:[#allocation5 + $0x708] sm:$0xff]
    %v316 = vld [vmem:[#allocation5 + $0x710] sm:$0xff]
    %v317 = vld [vmem:[#allocation5 + $0x718] sm:$0xff]
    %v318 = vld [vmem:[#allocation5 + $0x720] sm:$0xff]
    %v319 = vld [vmem:[#allocation5 + $0x728] sm:$0xff]
    %v320 = vld [vmem:[#allocation5 + $0x730] sm:$0xff]
    %v321 = vld [vmem:[#allocation5 + $0x738] sm:$0xff]
    %v322 = vld [vmem:[#allocation5 + $0x740] sm:$0xff]
    %v323 = vld [vmem:[#allocation5 + $0x748] sm:$0xff]
    %v324 = vld [vmem:[#allocation5 + $0x750] sm:$0xff]
    %v325 = vld [vmem:[#allocation5 + $0x758] sm:$0xff]
    %v326 = vld [vmem:[#allocation5 + $0x760] sm:$0xff]
    %v327 = vld [vmem:[#allocation5 + $0x768] sm:$0xff]
    %v328 = vld [vmem:[#allocation5 + $0x770] sm:$0xff]
    %v329 = vld [vmem:[#allocation5 + $0x778] sm:$0xff]
    %v330 = vld [vmem:[#allocation5 + $0x780] sm:$0xff]
    %v331 = vld [vmem:[#allocation5 + $0x788] sm:$0xff]
    %v332 = vld [vmem:[#allocation5 + $0x790] sm:$0xff]
    %v333 = vld [vmem:[#allocation5 + $0x798] sm:$0xff]
    %v334 = vld [vmem:[#allocation5 + $0x7a0] sm:$0xff]
    %v335 = vld [vmem:[#allocation5 + $0x7a8] sm:$0xff]
    %v336 = vld [vmem:[#allocation5 + $0x7b0] sm:$0xff]
    %v337 = vld [vmem:[#allocation5 + $0x7b8] sm:$0xff]
    %v338 = vld [vmem:[#allocation5 + $0x7c0] sm:$0xff]
    %v339 = vld [vmem:[#allocation5 + $0x7c8] sm:$0xff]
    %v340 = vld [vmem:[#allocation5 + $0x7d0] sm:$0xff]
    %v341 = vld [vmem:[#allocation5 + $0x7d8] sm:$0xff]
    %v342 = vld [vmem:[#allocation5 + $0x7e0] sm:$0xff]
    %v343 = vld [vmem:[#allocation5 + $0x7e8] sm:$0xff]
    %v344 = vld [vmem:[#allocation5 + $0x7f0] sm:$0xff]
    %v345 = vld [vmem:[#allocation5 + $0x7f8] sm:$0xff]
    %v346 = vld [vmem:[#allocation5 + $0x800] sm:$0xff]
    %v347 = vld [vmem:[#allocation5 + $0x808] sm:$0xff]
    %v348 = vld [vmem:[#allocation5 + $0x810] sm:$0xff]
    %v349 = vld [vmem:[#allocation5 + $0x818] sm:$0xff]
    %v350 = vld [vmem:[#allocation5 + $0x820] sm:$0xff]
    %v351 = vld [vmem:[#allocation5 + $0x828] sm:$0xff]
    %v352 = vld [vmem:[#allocation5 + $0x830] sm:$0xff]
    %v353 = vld [vmem:[#allocation5 + $0x838] sm:$0xff]
    %v354 = vld [vmem:[#allocation5 + $0x840] sm:$0xff]
    %v355 = vld [vmem:[#allocation5 + $0x848] sm:$0xff]
    %v356 = vld [vmem:[#allocation5 + $0x850] sm:$0xff]
    %v357 = vld [vmem:[#allocation5 + $0x858] sm:$0xff]
    %v358 = vld [vmem:[#allocation5 + $0x860] sm:$0xff]
    %v359 = vld [vmem:[#allocation5 + $0x868] sm:$0xff]
    %v360 = vld [vmem:[#allocation5 + $0x870] sm:$0xff]
    %v361 = vld [vmem:[#allocation5 + $0x878] sm:$0xff]
    %v362 = vld [vmem:[#allocation5 + $0x880] sm:$0xff]
    %v363 = vld [vmem:[#allocation5 + $0x888] sm:$0xff]
    %v364 = vld [vmem:[#allocation5 + $0x890] sm:$0xff]
    %v365 = vld [vmem:[#allocation5 + $0x898] sm:$0xff]
    %v366 = vld [vmem:[#allocation5 + $0x8a0] sm:$0xff]
    %v367 = vld [vmem:[#allocation5 + $0x8a8] sm:$0xff]
    %v368 = vld [vmem:[#allocation5 + $0x8b0] sm:$0xff]
    %v369 = vld [vmem:[#allocation5 + $0x8b8] sm:$0xff]
    %v370 = vld [vmem:[#allocation5 + $0x8c0] sm:$0xff]
    %v371 = vld [vmem:[#allocation5 + $0x8c8] sm:$0xff]
    %v372 = vld [vmem:[#allocation5 + $0x8d0] sm:$0xff]
    %v373 = vld [vmem:[#allocation5 + $0x8d8] sm:$0xff]
    %v374 = vld [vmem:[#allocation5 + $0x8e0] sm:$0xff]
    %v375 = vld [vmem:[#allocation5 + $0x8e8] sm:$0xff]
    %v376 = vld [vmem:[#allocation5 + $0x8f0] sm:$0xff]
    %v377 = vld [vmem:[#allocation5 + $0x8f8] sm:$0xff]
    %v378 = vld [vmem:[#allocation5 + $0x900] sm:$0xff]
    %v379 = vld [vmem:[#allocation5 + $0x908] sm:$0xff]
    %v380 = vld [vmem:[#allocation5 + $0x910] sm:$0xff]
    %v381 = vld [vmem:[#allocation5 + $0x918] sm:$0xff]
    %v382 = vld [vmem:[#allocation5 + $0x920] sm:$0xff]
    %v383 = vld [vmem:[#allocation5 + $0x928] sm:$0xff]
    %v384 = vld [vmem:[#allocation5 + $0x930] sm:$0xff]
    %v385 = vld [vmem:[#allocation5 + $0x938] sm:$0xff]
    %v386 = vld [vmem:[#allocation5 + $0x940] sm:$0xff]
    %v387 = vld [vmem:[#allocation5 + $0x948] sm:$0xff]
    %v388 = vld [vmem:[#allocation5 + $0x950] sm:$0xff]
    %v389 = vld [vmem:[#allocation5 + $0x958] sm:$0xff]
    %v390 = vld [vmem:[#allocation5 + $0x960] sm:$0xff]
    %v391 = vld [vmem:[#allocation5 + $0x968] sm:$0xff]
    %v392 = vld [vmem:[#allocation5 + $0x970] sm:$0xff]
    %v393 = vld [vmem:[#allocation5 + $0x978] sm:$0xff]
    %v394 = vld [vmem:[#allocation5 + $0x980] sm:$0xff]
    %v395 = vld [vmem:[#allocation5 + $0x988] sm:$0xff]
    %v396 = vld [vmem:[#allocation5 + $0x990] sm:$0xff]
    %v397 = vld [vmem:[#allocation5 + $0x998] sm:$0xff]
    %v398 = vld [vmem:[#allocation5 + $0x9a0] sm:$0xff]
    %v399 = vld [vmem:[#allocation5 + $0x9a8] sm:$0xff]
    %v400 = vld [vmem:[#allocation5 + $0x9b0] sm:$0xff]
    %v401 = vld [vmem:[#allocation5 + $0x9b8] sm:$0xff]
    %v402 = vld [vmem:[#allocation5 + $0x9c0] sm:$0xff]
    %v403 = vld [vmem:[#allocation5 + $0x9c8] sm:$0xff]
    %v404 = vld [vmem:[#allocation5 + $0x9d0] sm:$0xff]
    %v405 = vld [vmem:[#allocation5 + $0x9d8] sm:$0xff]
    %v406 = vld [vmem:[#allocation5 + $0x9e0] sm:$0xff]
    %v407 = vld [vmem:[#allocation5 + $0x9e8] sm:$0xff]
    %v408 = vld [vmem:[#allocation5 + $0x9f0] sm:$0xff]
    %v409 = vld [vmem:[#allocation5 + $0x9f8] sm:$0xff]
    %v410 = vld [vmem:[#allocation5 + $0xa00] sm:$0xff]
    %v411 = vld [vmem:[#allocation5 + $0xa08] sm:$0xff]
    %v412 = vld [vmem:[#allocation5 + $0xa10] sm:$0xff]
    %v413 = vld [vmem:[#allocation5 + $0xa18] sm:$0xff]
    %v414 = vld [vmem:[#allocation5 + $0xa20] sm:$0xff]
    %v415 = vld [vmem:[#allocation5 + $0xa28] sm:$0xff]
    %v416 = vld [vmem:[#allocation5 + $0xa30] sm:$0xff]
    %v417 = vld [vmem:[#allocation5 + $0xa38] sm:$0xff]
    %v418 = vld [vmem:[#allocation5 + $0xa40] sm:$0xff]
    %v419 = vld [vmem:[#allocation5 + $0xa48] sm:$0xff]
    %v420 = vld [vmem:[#allocation5 + $0xa50] sm:$0xff]
    %v421 = vld [vmem:[#allocation5 + $0xa58] sm:$0xff]
    %v422 = vld [vmem:[#allocation5 + $0xa60] sm:$0xff]
    %v423 = vld [vmem:[#allocation5 + $0xa68] sm:$0xff]
    %v424 = vld [vmem:[#allocation5 + $0xa70] sm:$0xff]
    %v425 = vld [vmem:[#allocation5 + $0xa78] sm:$0xff]
    %v426 = vld [vmem:[#allocation5 + $0xa80] sm:$0xff]
    %v427 = vld [vmem:[#allocation5 + $0xa88] sm:$0xff]
    %v428 = vld [vmem:[#allocation5 + $0xa90] sm:$0xff]
    %v429 = vld [vmem:[#allocation5 + $0xa98] sm:$0xff]
    %v430 = vld [vmem:[#allocation5 + $0xaa0] sm:$0xff]
    %v431 = vld [vmem:[#allocation5 + $0xaa8] sm:$0xff]
    %v432 = vld [vmem:[#allocation5 + $0xab0] sm:$0xff]
    %v433 = vld [vmem:[#allocation5 + $0xab8] sm:$0xff]
    %v434 = vld [vmem:[#allocation5 + $0xac0] sm:$0xff]
    %v435 = vld [vmem:[#allocation5 + $0xac8] sm:$0xff]
    %v436 = vld [vmem:[#allocation5 + $0xad0] sm:$0xff]
    %v437 = vld [vmem:[#allocation5 + $0xad8] sm:$0xff]
    %v438 = vld [vmem:[#allocation5 + $0xae0] sm:$0xff]
    %v439 = vld [vmem:[#allocation5 + $0xae8] sm:$0xff]
    %v440 = vld [vmem:[#allocation5 + $0xaf0] sm:$0xff]
    %v441 = vld [vmem:[#allocation5 + $0xaf8] sm:$0xff]
    %v442 = vld [vmem:[#allocation5 + $0xb00] sm:$0xff]
    %v443 = vld [vmem:[#allocation5 + $0xb08] sm:$0xff]
    %v444 = vld [vmem:[#allocation5 + $0xb10] sm:$0xff]
    %v445 = vld [vmem:[#allocation5 + $0xb18] sm:$0xff]
    %v446 = vld [vmem:[#allocation5 + $0xb20] sm:$0xff]
    %v447 = vld [vmem:[#allocation5 + $0xb28] sm:$0xff]
    %v448 = vld [vmem:[#allocation5 + $0xb30] sm:$0xff]
    %v449 = vld [vmem:[#allocation5 + $0xb38] sm:$0xff]
    %v450 = vld [vmem:[#allocation5 + $0xb40] sm:$0xff]
    %v451 = vld [vmem:[#allocation5 + $0xb48] sm:$0xff]
    %v452 = vld [vmem:[#allocation5 + $0xb50] sm:$0xff]
    %v453 = vld [vmem:[#allocation5 + $0xb58] sm:$0xff]
    %v454 = vld [vmem:[#allocation5 + $0xb60] sm:$0xff]
    %v455 = vld [vmem:[#allocation5 + $0xb68] sm:$0xff]
    %v456 = vld [vmem:[#allocation5 + $0xb70] sm:$0xff]
    %v457 = vld [vmem:[#allocation5 + $0xb78] sm:$0xff]
    %v458 = vld [vmem:[#allocation5 + $0xb80] sm:$0xff]
    %v459 = vld [vmem:[#allocation5 + $0xb88] sm:$0xff]
    %v460 = vld [vmem:[#allocation5 + $0xb90] sm:$0xff]
    %v461 = vld [vmem:[#allocation5 + $0xb98] sm:$0xff]
    %v462 = vld [vmem:[#allocation5 + $0xba0] sm:$0xff]
    %v463 = vld [vmem:[#allocation5 + $0xba8] sm:$0xff]
    %v464 = vld [vmem:[#allocation5 + $0xbb0] sm:$0xff]
    %v465 = vld [vmem:[#allocation5 + $0xbb8] sm:$0xff]
    %v466 = vld [vmem:[#allocation5 + $0xbc0] sm:$0xff]
    %v467 = vld [vmem:[#allocation5 + $0xbc8] sm:$0xff]
    %v468 = vld [vmem:[#allocation5 + $0xbd0] sm:$0xff]
    %v469 = vld [vmem:[#allocation5 + $0xbd8] sm:$0xff]
    %v470 = vld [vmem:[#allocation5 + $0xbe0] sm:$0xff]
    %v471 = vld [vmem:[#allocation5 + $0xbe8] sm:$0xff]
    %v472 = vld [vmem:[#allocation5 + $0xbf0] sm:$0xff]
    %v473 = vld [vmem:[#allocation5 + $0xbf8] sm:$0xff]
    %v474 = vld [vmem:[#allocation7] sm:$0x3f]
    %v476 = vlaneseq
    %v477 = vshrl.u32 %v476, 7
    %v478 = vsub.s32 0, %v477
    %v479 = vrot.slane %v474, %v478
    %v480 = vlaneseq
    %v481 = vshrl.u32 %v480, 7
    %v482 = vsub.s32 1, %v481
    %v483 = vrot.slane %v474, %v482
    %v484 = vlaneseq
    %v485 = vshrl.u32 %v484, 7
    %v486 = vsub.s32 2, %v485
    %v487 = vrot.slane %v474, %v486
    %v488 = vlaneseq
    %v489 = vshrl.u32 %v488, 7
    %v490 = vsub.s32 3, %v489
    %v491 = vrot.slane %v474, %v490
    %v492 = vlaneseq
    %v493 = vshrl.u32 %v492, 7
    %v494 = vsub.s32 4, %v493
    %v495 = vrot.slane %v474, %v494
    %v496 = vlaneseq
    %v497 = vshrl.u32 %v496, 7
    %v498 = vsub.s32 5, %v497
    %v499 = vrot.slane %v474, %v498
    %v542 = vunpack.c.l.b16 %v54
    %v543 = vunpack.c.h.b16 %v54
    %v544 = vunpack.c.l.b16 %v55
    %v545 = vunpack.c.h.b16 %v55
    %v546 = vunpack.c.l.b16 %v56
    %v547 = vunpack.c.h.b16 %v56
    %v548 = vunpack.c.l.b16 %v57
    %v549 = vunpack.c.h.b16 %v57
    %v550 = vunpack.c.l.b16 %v58
    %v551 = vunpack.c.h.b16 %v58
    %v552 = vunpack.c.l.b16 %v59
    %v553 = vunpack.c.h.b16 %v59
    %v554 = vunpack.c.l.b16 %v60
    %v555 = vunpack.c.h.b16 %v60
    %v556 = vunpack.c.l.b16 %v61
    %v557 = vunpack.c.h.b16 %v61
    %v558 = vunpack.c.l.b16 %v62
    %v559 = vunpack.c.h.b16 %v62
    %v560 = vunpack.c.l.b16 %v63
    %v561 = vunpack.c.h.b16 %v63
    %v562 = vunpack.c.l.b16 %v64
    %v563 = vunpack.c.h.b16 %v64
    %v564 = vunpack.c.l.b16 %v65
    %v565 = vunpack.c.h.b16 %v65
    %v566 = vunpack.c.l.b16 %v66
    %v567 = vunpack.c.h.b16 %v66
    %v568 = vunpack.c.l.b16 %v67
    %v569 = vunpack.c.h.b16 %v67
    %v570 = vunpack.c.l.b16 %v68
    %v571 = vunpack.c.h.b16 %v68
    %v572 = vunpack.c.l.b16 %v69
    %v573 = vunpack.c.h.b16 %v69
    %v574 = vunpack.c.l.b16 %v70
    %v575 = vunpack.c.h.b16 %v70
    %v576 = vunpack.c.l.b16 %v71
    %v577 = vunpack.c.h.b16 %v71
    %v578 = vunpack.c.l.b16 %v72
    %v579 = vunpack.c.h.b16 %v72
    %v580 = vunpack.c.l.b16 %v73
    %v581 = vunpack.c.h.b16 %v73
    %v582 = vunpack.c.l.b16 %v74
    %v583 = vunpack.c.h.b16 %v74
    %v584 = vunpack.c.l.b16 %v75
    %v585 = vunpack.c.h.b16 %v75
    %v586 = vunpack.c.l.b16 %v76
    %v587 = vunpack.c.h.b16 %v76
    %v588 = vunpack.c.l.b16 %v77
    %v589 = vunpack.c.h.b16 %v77
    %v590 = vunpack.c.l.b16 %v78
    %v591 = vunpack.c.h.b16 %v78
    %v592 = vunpack.c.l.b16 %v79
    %v593 = vunpack.c.h.b16 %v79
    %v594 = vunpack.c.l.b16 %v80
    %v595 = vunpack.c.h.b16 %v80
    %v596 = vunpack.c.l.b16 %v81
    %v597 = vunpack.c.h.b16 %v81
    %v598 = vunpack.c.l.b16 %v82
    %v599 = vunpack.c.h.b16 %v82
    %v600 = vunpack.c.l.b16 %v83
    %v601 = vunpack.c.h.b16 %v83
    %v602 = vunpack.c.l.b16 %v84
    %v603 = vunpack.c.h.b16 %v84
    %v604 = vunpack.c.l.b16 %v85
    %v605 = vunpack.c.h.b16 %v85
    %v606 = vunpack.c.l.b16 %v86
    %v607 = vunpack.c.h.b16 %v86
    %v608 = vunpack.c.l.b16 %v87
    %v609 = vunpack.c.h.b16 %v87
    %v610 = vunpack.c.l.b16 %v88
    %v611 = vunpack.c.h.b16 %v88
    %v612 = vunpack.c.l.b16 %v89
    %v613 = vunpack.c.h.b16 %v89
    %v614 = vpack.c.b16 %v550, %v542
    %v615 = vpack.c.b16 %v551, %v543
    %v616 = vpack.c.b16 %v552, %v544
    %v617 = vpack.c.b16 %v553, %v545
    %v618 = vpack.c.b16 %v554, %v546
    %v619 = vpack.c.b16 %v555, %v547
    %v620 = vpack.c.b16 %v556, %v548
    %v621 = vpack.c.b16 %v557, %v549
    %v622 = vpack.c.b16 %v566, %v558
    %v623 = vpack.c.b16 %v567, %v559
    %v624 = vpack.c.b16 %v568, %v560
    %v625 = vpack.c.b16 %v569, %v561
    %v626 = vpack.c.b16 %v570, %v562
    %v627 = vpack.c.b16 %v571, %v563
    %v628 = vpack.c.b16 %v572, %v564
    %v629 = vpack.c.b16 %v573, %v565
    %v630 = vpack.c.b16 %v582, %v574
    %v631 = vpack.c.b16 %v583, %v575
    %v632 = vpack.c.b16 %v584, %v576
    %v633 = vpack.c.b16 %v585, %v577
    %v634 = vpack.c.b16 %v586, %v578
    %v635 = vpack.c.b16 %v587, %v579
    %v636 = vpack.c.b16 %v588, %v580
    %v637 = vpack.c.b16 %v589, %v581
    %v638 = vpack.c.b16 %v598, %v590
    %v639 = vpack.c.b16 %v599, %v591
    %v640 = vpack.c.b16 %v600, %v592
    %v641 = vpack.c.b16 %v601, %v593
    %v642 = vpack.c.b16 %v602, %v594
    %v643 = vpack.c.b16 %v603, %v595
    %v644 = vpack.c.b16 %v604, %v596
    %v645 = vpack.c.b16 %v605, %v597
    %v646 = vpack.c.b16 %v606, %v606
    %v647 = vpack.c.b16 %v607, %v607
    %v648 = vpack.c.b16 %v608, %v608
    %v649 = vpack.c.b16 %v609, %v609
    %v650 = vpack.c.b16 %v610, %v610
    %v651 = vpack.c.b16 %v611, %v611
    %v652 = vpack.c.b16 %v612, %v612
    %v653 = vpack.c.b16 %v613, %v613
    %v1078 = vunpack.c.l.b16 %v90
    %v1079 = vunpack.c.h.b16 %v90
    %v1080 = vunpack.c.l.b16 %v91
    %v1081 = vunpack.c.h.b16 %v91
    %v1082 = vunpack.c.l.b16 %v92
    %v1083 = vunpack.c.h.b16 %v92
    %v1084 = vunpack.c.l.b16 %v93
    %v1085 = vunpack.c.h.b16 %v93
    %v1086 = vunpack.c.l.b16 %v94
    %v1087 = vunpack.c.h.b16 %v94
    %v1088 = vunpack.c.l.b16 %v95
    %v1089 = vunpack.c.h.b16 %v95
    %v1090 = vunpack.c.l.b16 %v96
    %v1091 = vunpack.c.h.b16 %v96
    %v1092 = vunpack.c.l.b16 %v97
    %v1093 = vunpack.c.h.b16 %v97
    %v1094 = vunpack.c.l.b16 %v98
    %v1095 = vunpack.c.h.b16 %v98
    %v1096 = vunpack.c.l.b16 %v99
    %v1097 = vunpack.c.h.b16 %v99
    %v1098 = vunpack.c.l.b16 %v100
    %v1099 = vunpack.c.h.b16 %v100
    %v1100 = vunpack.c.l.b16 %v101
    %v1101 = vunpack.c.h.b16 %v101
    %v1102 = vunpack.c.l.b16 %v102
    %v1103 = vunpack.c.h.b16 %v102
    %v1104 = vunpack.c.l.b16 %v103
    %v1105 = vunpack.c.h.b16 %v103
    %v1106 = vunpack.c.l.b16 %v104
    %v1107 = vunpack.c.h.b16 %v104
    %v1108 = vunpack.c.l.b16 %v105
    %v1109 = vunpack.c.h.b16 %v105
    %v1110 = vunpack.c.l.b16 %v106
    %v1111 = vunpack.c.h.b16 %v106
    %v1112 = vunpack.c.l.b16 %v107
    %v1113 = vunpack.c.h.b16 %v107
    %v1114 = vunpack.c.l.b16 %v108
    %v1115 = vunpack.c.h.b16 %v108
    %v1116 = vunpack.c.l.b16 %v109
    %v1117 = vunpack.c.h.b16 %v109
    %v1118 = vunpack.c.l.b16 %v110
    %v1119 = vunpack.c.h.b16 %v110
    %v1120 = vunpack.c.l.b16 %v111
    %v1121 = vunpack.c.h.b16 %v111
    %v1122 = vunpack.c.l.b16 %v112
    %v1123 = vunpack.c.h.b16 %v112
    %v1124 = vunpack.c.l.b16 %v113
    %v1125 = vunpack.c.h.b16 %v113
    %v1126 = vunpack.c.l.b16 %v114
    %v1127 = vunpack.c.h.b16 %v114
    %v1128 = vunpack.c.l.b16 %v115
    %v1129 = vunpack.c.h.b16 %v115
    %v1130 = vunpack.c.l.b16 %v116
    %v1131 = vunpack.c.h.b16 %v116
    %v1132 = vunpack.c.l.b16 %v117
    %v1133 = vunpack.c.h.b16 %v117
    %v1134 = vunpack.c.l.b16 %v118
    %v1135 = vunpack.c.h.b16 %v118
    %v1136 = vunpack.c.l.b16 %v119
    %v1137 = vunpack.c.h.b16 %v119
    %v1138 = vunpack.c.l.b16 %v120
    %v1139 = vunpack.c.h.b16 %v120
    %v1140 = vunpack.c.l.b16 %v121
    %v1141 = vunpack.c.h.b16 %v121
    %v1142 = vunpack.c.l.b16 %v122
    %v1143 = vunpack.c.h.b16 %v122
    %v1144 = vunpack.c.l.b16 %v123
    %v1145 = vunpack.c.h.b16 %v123
    %v1146 = vunpack.c.l.b16 %v124
    %v1147 = vunpack.c.h.b16 %v124
    %v1148 = vunpack.c.l.b16 %v125
    %v1149 = vunpack.c.h.b16 %v125
    %v1150 = vunpack.c.l.b16 %v126
    %v1151 = vunpack.c.h.b16 %v126
    %v1152 = vunpack.c.l.b16 %v127
    %v1153 = vunpack.c.h.b16 %v127
    %v1154 = vunpack.c.l.b16 %v128
    %v1155 = vunpack.c.h.b16 %v128
    %v1156 = vunpack.c.l.b16 %v129
    %v1157 = vunpack.c.h.b16 %v129
    %v1158 = vunpack.c.l.b16 %v130
    %v1159 = vunpack.c.h.b16 %v130
    %v1160 = vunpack.c.l.b16 %v131
    %v1161 = vunpack.c.h.b16 %v131
    %v1162 = vunpack.c.l.b16 %v132
    %v1163 = vunpack.c.h.b16 %v132
    %v1164 = vunpack.c.l.b16 %v133
    %v1165 = vunpack.c.h.b16 %v133
    %v1166 = vunpack.c.l.b16 %v134
    %v1167 = vunpack.c.h.b16 %v134
    %v1168 = vunpack.c.l.b16 %v135
    %v1169 = vunpack.c.h.b16 %v135
    %v1170 = vunpack.c.l.b16 %v136
    %v1171 = vunpack.c.h.b16 %v136
    %v1172 = vunpack.c.l.b16 %v137
    %v1173 = vunpack.c.h.b16 %v137
    %v1174 = vunpack.c.l.b16 %v138
    %v1175 = vunpack.c.h.b16 %v138
    %v1176 = vunpack.c.l.b16 %v139
    %v1177 = vunpack.c.h.b16 %v139
    %v1178 = vunpack.c.l.b16 %v140
    %v1179 = vunpack.c.h.b16 %v140
    %v1180 = vunpack.c.l.b16 %v141
    %v1181 = vunpack.c.h.b16 %v141
    %v1182 = vunpack.c.l.b16 %v142
    %v1183 = vunpack.c.h.b16 %v142
    %v1184 = vunpack.c.l.b16 %v143
    %v1185 = vunpack.c.h.b16 %v143
    %v1186 = vunpack.c.l.b16 %v144
    %v1187 = vunpack.c.h.b16 %v144
    %v1188 = vunpack.c.l.b16 %v145
    %v1189 = vunpack.c.h.b16 %v145
    %v1190 = vunpack.c.l.b16 %v146
    %v1191 = vunpack.c.h.b16 %v146
    %v1192 = vunpack.c.l.b16 %v147
    %v1193 = vunpack.c.h.b16 %v147
    %v1194 = vunpack.c.l.b16 %v148
    %v1195 = vunpack.c.h.b16 %v148
    %v1196 = vunpack.c.l.b16 %v149
    %v1197 = vunpack.c.h.b16 %v149
    %v1198 = vunpack.c.l.b16 %v150
    %v1199 = vunpack.c.h.b16 %v150
    %v1200 = vunpack.c.l.b16 %v151
    %v1201 = vunpack.c.h.b16 %v151
    %v1202 = vunpack.c.l.b16 %v152
    %v1203 = vunpack.c.h.b16 %v152
    %v1204 = vunpack.c.l.b16 %v153
    %v1205 = vunpack.c.h.b16 %v153
    %v1206 = vunpack.c.l.b16 %v154
    %v1207 = vunpack.c.h.b16 %v154
    %v1208 = vunpack.c.l.b16 %v155
    %v1209 = vunpack.c.h.b16 %v155
    %v1210 = vunpack.c.l.b16 %v156
    %v1211 = vunpack.c.h.b16 %v156
    %v1212 = vunpack.c.l.b16 %v157
    %v1213 = vunpack.c.h.b16 %v157
    %v1214 = vunpack.c.l.b16 %v158
    %v1215 = vunpack.c.h.b16 %v158
    %v1216 = vunpack.c.l.b16 %v159
    %v1217 = vunpack.c.h.b16 %v159
    %v1218 = vunpack.c.l.b16 %v160
    %v1219 = vunpack.c.h.b16 %v160
    %v1220 = vunpack.c.l.b16 %v161
    %v1221 = vunpack.c.h.b16 %v161
    %v1222 = vunpack.c.l.b16 %v162
    %v1223 = vunpack.c.h.b16 %v162
    %v1224 = vunpack.c.l.b16 %v163
    %v1225 = vunpack.c.h.b16 %v163
    %v1226 = vunpack.c.l.b16 %v164
    %v1227 = vunpack.c.h.b16 %v164
    %v1228 = vunpack.c.l.b16 %v165
    %v1229 = vunpack.c.h.b16 %v165
    %v1230 = vunpack.c.l.b16 %v166
    %v1231 = vunpack.c.h.b16 %v166
    %v1232 = vunpack.c.l.b16 %v167
    %v1233 = vunpack.c.h.b16 %v167
    %v1234 = vunpack.c.l.b16 %v168
    %v1235 = vunpack.c.h.b16 %v168
    %v1236 = vunpack.c.l.b16 %v169
    %v1237 = vunpack.c.h.b16 %v169
    %v1238 = vunpack.c.l.b16 %v170
    %v1239 = vunpack.c.h.b16 %v170
    %v1240 = vunpack.c.l.b16 %v171
    %v1241 = vunpack.c.h.b16 %v171
    %v1242 = vunpack.c.l.b16 %v172
    %v1243 = vunpack.c.h.b16 %v172
    %v1244 = vunpack.c.l.b16 %v173
    %v1245 = vunpack.c.h.b16 %v173
    %v1246 = vunpack.c.l.b16 %v174
    %v1247 = vunpack.c.h.b16 %v174
    %v1248 = vunpack.c.l.b16 %v175
    %v1249 = vunpack.c.h.b16 %v175
    %v1250 = vunpack.c.l.b16 %v176
    %v1251 = vunpack.c.h.b16 %v176
    %v1252 = vunpack.c.l.b16 %v177
    %v1253 = vunpack.c.h.b16 %v177
    %v1254 = vunpack.c.l.b16 %v178
    %v1255 = vunpack.c.h.b16 %v178
    %v1256 = vunpack.c.l.b16 %v179
    %v1257 = vunpack.c.h.b16 %v179
    %v1258 = vunpack.c.l.b16 %v180
    %v1259 = vunpack.c.h.b16 %v180
    %v1260 = vunpack.c.l.b16 %v181
    %v1261 = vunpack.c.h.b16 %v181
    %v1262 = vunpack.c.l.b16 %v182
    %v1263 = vunpack.c.h.b16 %v182
    %v1264 = vunpack.c.l.b16 %v183
    %v1265 = vunpack.c.h.b16 %v183
    %v1266 = vunpack.c.l.b16 %v184
    %v1267 = vunpack.c.h.b16 %v184
    %v1268 = vunpack.c.l.b16 %v185
    %v1269 = vunpack.c.h.b16 %v185
    %v1270 = vunpack.c.l.b16 %v186
    %v1271 = vunpack.c.h.b16 %v186
    %v1272 = vunpack.c.l.b16 %v187
    %v1273 = vunpack.c.h.b16 %v187
    %v1274 = vunpack.c.l.b16 %v188
    %v1275 = vunpack.c.h.b16 %v188
    %v1276 = vunpack.c.l.b16 %v189
    %v1277 = vunpack.c.h.b16 %v189
    %v1278 = vunpack.c.l.b16 %v190
    %v1279 = vunpack.c.h.b16 %v190
    %v1280 = vunpack.c.l.b16 %v191
    %v1281 = vunpack.c.h.b16 %v191
    %v1282 = vunpack.c.l.b16 %v192
    %v1283 = vunpack.c.h.b16 %v192
    %v1284 = vunpack.c.l.b16 %v193
    %v1285 = vunpack.c.h.b16 %v193
    %v1286 = vunpack.c.l.b16 %v194
    %v1287 = vunpack.c.h.b16 %v194
    %v1288 = vunpack.c.l.b16 %v195
    %v1289 = vunpack.c.h.b16 %v195
    %v1290 = vunpack.c.l.b16 %v196
    %v1291 = vunpack.c.h.b16 %v196
    %v1292 = vunpack.c.l.b16 %v197
    %v1293 = vunpack.c.h.b16 %v197
    %v1294 = vunpack.c.l.b16 %v198
    %v1295 = vunpack.c.h.b16 %v198
    %v1296 = vunpack.c.l.b16 %v199
    %v1297 = vunpack.c.h.b16 %v199
    %v1298 = vunpack.c.l.b16 %v200
    %v1299 = vunpack.c.h.b16 %v200
    %v1300 = vunpack.c.l.b16 %v201
    %v1301 = vunpack.c.h.b16 %v201
    %v1302 = vunpack.c.l.b16 %v202
    %v1303 = vunpack.c.h.b16 %v202
    %v1304 = vunpack.c.l.b16 %v203
    %v1305 = vunpack.c.h.b16 %v203
    %v1306 = vunpack.c.l.b16 %v204
    %v1307 = vunpack.c.h.b16 %v204
    %v1308 = vunpack.c.l.b16 %v205
    %v1309 = vunpack.c.h.b16 %v205
    %v1310 = vunpack.c.l.b16 %v206
    %v1311 = vunpack.c.h.b16 %v206
    %v1312 = vunpack.c.l.b16 %v207
    %v1313 = vunpack.c.h.b16 %v207
    %v1314 = vunpack.c.l.b16 %v208
    %v1315 = vunpack.c.h.b16 %v208
    %v1316 = vunpack.c.l.b16 %v209
    %v1317 = vunpack.c.h.b16 %v209
    %v1318 = vunpack.c.l.b16 %v210
    %v1319 = vunpack.c.h.b16 %v210
    %v1320 = vunpack.c.l.b16 %v211
    %v1321 = vunpack.c.h.b16 %v211
    %v1322 = vunpack.c.l.b16 %v212
    %v1323 = vunpack.c.h.b16 %v212
    %v1324 = vunpack.c.l.b16 %v213
    %v1325 = vunpack.c.h.b16 %v213
    %v1326 = vunpack.c.l.b16 %v214
    %v1327 = vunpack.c.h.b16 %v214
    %v1328 = vunpack.c.l.b16 %v215
    %v1329 = vunpack.c.h.b16 %v215
    %v1330 = vunpack.c.l.b16 %v216
    %v1331 = vunpack.c.h.b16 %v216
    %v1332 = vunpack.c.l.b16 %v217
    %v1333 = vunpack.c.h.b16 %v217
    %v1334 = vunpack.c.l.b16 %v218
    %v1335 = vunpack.c.h.b16 %v218
    %v1336 = vunpack.c.l.b16 %v219
    %v1337 = vunpack.c.h.b16 %v219
    %v1338 = vunpack.c.l.b16 %v220
    %v1339 = vunpack.c.h.b16 %v220
    %v1340 = vunpack.c.l.b16 %v221
    %v1341 = vunpack.c.h.b16 %v221
    %v1342 = vunpack.c.l.b16 %v222
    %v1343 = vunpack.c.h.b16 %v222
    %v1344 = vunpack.c.l.b16 %v223
    %v1345 = vunpack.c.h.b16 %v223
    %v1346 = vunpack.c.l.b16 %v224
    %v1347 = vunpack.c.h.b16 %v224
    %v1348 = vunpack.c.l.b16 %v225
    %v1349 = vunpack.c.h.b16 %v225
    %v1350 = vunpack.c.l.b16 %v226
    %v1351 = vunpack.c.h.b16 %v226
    %v1352 = vunpack.c.l.b16 %v227
    %v1353 = vunpack.c.h.b16 %v227
    %v1354 = vunpack.c.l.b16 %v228
    %v1355 = vunpack.c.h.b16 %v228
    %v1356 = vunpack.c.l.b16 %v229
    %v1357 = vunpack.c.h.b16 %v229
    %v1358 = vunpack.c.l.b16 %v230
    %v1359 = vunpack.c.h.b16 %v230
    %v1360 = vunpack.c.l.b16 %v231
    %v1361 = vunpack.c.h.b16 %v231
    %v1362 = vunpack.c.l.b16 %v232
    %v1363 = vunpack.c.h.b16 %v232
    %v1364 = vunpack.c.l.b16 %v233
    %v1365 = vunpack.c.h.b16 %v233
    %v1366 = vunpack.c.l.b16 %v234
    %v1367 = vunpack.c.h.b16 %v234
    %v1368 = vunpack.c.l.b16 %v235
    %v1369 = vunpack.c.h.b16 %v235
    %v1370 = vunpack.c.l.b16 %v236
    %v1371 = vunpack.c.h.b16 %v236
    %v1372 = vunpack.c.l.b16 %v237
    %v1373 = vunpack.c.h.b16 %v237
    %v1374 = vunpack.c.l.b16 %v238
    %v1375 = vunpack.c.h.b16 %v238
    %v1376 = vunpack.c.l.b16 %v239
    %v1377 = vunpack.c.h.b16 %v239
    %v1378 = vunpack.c.l.b16 %v240
    %v1379 = vunpack.c.h.b16 %v240
    %v1380 = vunpack.c.l.b16 %v241
    %v1381 = vunpack.c.h.b16 %v241
    %v1382 = vunpack.c.l.b16 %v242
    %v1383 = vunpack.c.h.b16 %v242
    %v1384 = vunpack.c.l.b16 %v243
    %v1385 = vunpack.c.h.b16 %v243
    %v1386 = vunpack.c.l.b16 %v244
    %v1387 = vunpack.c.h.b16 %v244
    %v1388 = vunpack.c.l.b16 %v245
    %v1389 = vunpack.c.h.b16 %v245
    %v1390 = vunpack.c.l.b16 %v246
    %v1391 = vunpack.c.h.b16 %v246
    %v1392 = vunpack.c.l.b16 %v247
    %v1393 = vunpack.c.h.b16 %v247
    %v1394 = vunpack.c.l.b16 %v248
    %v1395 = vunpack.c.h.b16 %v248
    %v1396 = vunpack.c.l.b16 %v249
    %v1397 = vunpack.c.h.b16 %v249
    %v1398 = vunpack.c.l.b16 %v250
    %v1399 = vunpack.c.h.b16 %v250
    %v1400 = vunpack.c.l.b16 %v251
    %v1401 = vunpack.c.h.b16 %v251
    %v1402 = vunpack.c.l.b16 %v252
    %v1403 = vunpack.c.h.b16 %v252
    %v1404 = vunpack.c.l.b16 %v253
    %v1405 = vunpack.c.h.b16 %v253
    %v1406 = vunpack.c.l.b16 %v254
    %v1407 = vunpack.c.h.b16 %v254
    %v1408 = vunpack.c.l.b16 %v255
    %v1409 = vunpack.c.h.b16 %v255
    %v1410 = vunpack.c.l.b16 %v256
    %v1411 = vunpack.c.h.b16 %v256
    %v1412 = vunpack.c.l.b16 %v257
    %v1413 = vunpack.c.h.b16 %v257
    %v1414 = vunpack.c.l.b16 %v258
    %v1415 = vunpack.c.h.b16 %v258
    %v1416 = vunpack.c.l.b16 %v259
    %v1417 = vunpack.c.h.b16 %v259
    %v1418 = vunpack.c.l.b16 %v260
    %v1419 = vunpack.c.h.b16 %v260
    %v1420 = vunpack.c.l.b16 %v261
    %v1421 = vunpack.c.h.b16 %v261
    %v1422 = vunpack.c.l.b16 %v262
    %v1423 = vunpack.c.h.b16 %v262
    %v1424 = vunpack.c.l.b16 %v263
    %v1425 = vunpack.c.h.b16 %v263
    %v1426 = vunpack.c.l.b16 %v264
    %v1427 = vunpack.c.h.b16 %v264
    %v1428 = vunpack.c.l.b16 %v265
    %v1429 = vunpack.c.h.b16 %v265
    %v1430 = vunpack.c.l.b16 %v266
    %v1431 = vunpack.c.h.b16 %v266
    %v1432 = vunpack.c.l.b16 %v267
    %v1433 = vunpack.c.h.b16 %v267
    %v1434 = vunpack.c.l.b16 %v268
    %v1435 = vunpack.c.h.b16 %v268
    %v1436 = vunpack.c.l.b16 %v269
    %v1437 = vunpack.c.h.b16 %v269
    %v1438 = vunpack.c.l.b16 %v270
    %v1439 = vunpack.c.h.b16 %v270
    %v1440 = vunpack.c.l.b16 %v271
    %v1441 = vunpack.c.h.b16 %v271
    %v1442 = vunpack.c.l.b16 %v272
    %v1443 = vunpack.c.h.b16 %v272
    %v1444 = vunpack.c.l.b16 %v273
    %v1445 = vunpack.c.h.b16 %v273
    %v1446 = vunpack.c.l.b16 %v274
    %v1447 = vunpack.c.h.b16 %v274
    %v1448 = vunpack.c.l.b16 %v275
    %v1449 = vunpack.c.h.b16 %v275
    %v1450 = vunpack.c.l.b16 %v276
    %v1451 = vunpack.c.h.b16 %v276
    %v1452 = vunpack.c.l.b16 %v277
    %v1453 = vunpack.c.h.b16 %v277
    %v1454 = vunpack.c.l.b16 %v278
    %v1455 = vunpack.c.h.b16 %v278
    %v1456 = vunpack.c.l.b16 %v279
    %v1457 = vunpack.c.h.b16 %v279
    %v1458 = vunpack.c.l.b16 %v280
    %v1459 = vunpack.c.h.b16 %v280
    %v1460 = vunpack.c.l.b16 %v281
    %v1461 = vunpack.c.h.b16 %v281
    %v1462 = vunpack.c.l.b16 %v282
    %v1463 = vunpack.c.h.b16 %v282
    %v1464 = vunpack.c.l.b16 %v283
    %v1465 = vunpack.c.h.b16 %v283
    %v1466 = vunpack.c.l.b16 %v284
    %v1467 = vunpack.c.h.b16 %v284
    %v1468 = vunpack.c.l.b16 %v285
    %v1469 = vunpack.c.h.b16 %v285
    %v1470 = vunpack.c.l.b16 %v286
    %v1471 = vunpack.c.h.b16 %v286
    %v1472 = vunpack.c.l.b16 %v287
    %v1473 = vunpack.c.h.b16 %v287
    %v1474 = vunpack.c.l.b16 %v288
    %v1475 = vunpack.c.h.b16 %v288
    %v1476 = vunpack.c.l.b16 %v289
    %v1477 = vunpack.c.h.b16 %v289
    %v1478 = vunpack.c.l.b16 %v290
    %v1479 = vunpack.c.h.b16 %v290
    %v1480 = vunpack.c.l.b16 %v291
    %v1481 = vunpack.c.h.b16 %v291
    %v1482 = vunpack.c.l.b16 %v292
    %v1483 = vunpack.c.h.b16 %v292
    %v1484 = vunpack.c.l.b16 %v293
    %v1485 = vunpack.c.h.b16 %v293
    %v1486 = vunpack.c.l.b16 %v294
    %v1487 = vunpack.c.h.b16 %v294
    %v1488 = vunpack.c.l.b16 %v295
    %v1489 = vunpack.c.h.b16 %v295
    %v1490 = vunpack.c.l.b16 %v296
    %v1491 = vunpack.c.h.b16 %v296
    %v1492 = vunpack.c.l.b16 %v297
    %v1493 = vunpack.c.h.b16 %v297
    %v1494 = vunpack.c.l.b16 %v298
    %v1495 = vunpack.c.h.b16 %v298
    %v1496 = vunpack.c.l.b16 %v299
    %v1497 = vunpack.c.h.b16 %v299
    %v1498 = vunpack.c.l.b16 %v300
    %v1499 = vunpack.c.h.b16 %v300
    %v1500 = vunpack.c.l.b16 %v301
    %v1501 = vunpack.c.h.b16 %v301
    %v1502 = vunpack.c.l.b16 %v302
    %v1503 = vunpack.c.h.b16 %v302
    %v1504 = vunpack.c.l.b16 %v303
    %v1505 = vunpack.c.h.b16 %v303
    %v1506 = vunpack.c.l.b16 %v304
    %v1507 = vunpack.c.h.b16 %v304
    %v1508 = vunpack.c.l.b16 %v305
    %v1509 = vunpack.c.h.b16 %v305
    %v1510 = vunpack.c.l.b16 %v306
    %v1511 = vunpack.c.h.b16 %v306
    %v1512 = vunpack.c.l.b16 %v307
    %v1513 = vunpack.c.h.b16 %v307
    %v1514 = vunpack.c.l.b16 %v308
    %v1515 = vunpack.c.h.b16 %v308
    %v1516 = vunpack.c.l.b16 %v309
    %v1517 = vunpack.c.h.b16 %v309
    %v1518 = vunpack.c.l.b16 %v310
    %v1519 = vunpack.c.h.b16 %v310
    %v1520 = vunpack.c.l.b16 %v311
    %v1521 = vunpack.c.h.b16 %v311
    %v1522 = vunpack.c.l.b16 %v312
    %v1523 = vunpack.c.h.b16 %v312
    %v1524 = vunpack.c.l.b16 %v313
    %v1525 = vunpack.c.h.b16 %v313
    %v1526 = vunpack.c.l.b16 %v314
    %v1527 = vunpack.c.h.b16 %v314
    %v1528 = vunpack.c.l.b16 %v315
    %v1529 = vunpack.c.h.b16 %v315
    %v1530 = vunpack.c.l.b16 %v316
    %v1531 = vunpack.c.h.b16 %v316
    %v1532 = vunpack.c.l.b16 %v317
    %v1533 = vunpack.c.h.b16 %v317
    %v1534 = vunpack.c.l.b16 %v318
    %v1535 = vunpack.c.h.b16 %v318
    %v1536 = vunpack.c.l.b16 %v319
    %v1537 = vunpack.c.h.b16 %v319
    %v1538 = vunpack.c.l.b16 %v320
    %v1539 = vunpack.c.h.b16 %v320
    %v1540 = vunpack.c.l.b16 %v321
    %v1541 = vunpack.c.h.b16 %v321
    %v1542 = vunpack.c.l.b16 %v322
    %v1543 = vunpack.c.h.b16 %v322
    %v1544 = vunpack.c.l.b16 %v323
    %v1545 = vunpack.c.h.b16 %v323
    %v1546 = vunpack.c.l.b16 %v324
    %v1547 = vunpack.c.h.b16 %v324
    %v1548 = vunpack.c.l.b16 %v325
    %v1549 = vunpack.c.h.b16 %v325
    %v1550 = vunpack.c.l.b16 %v326
    %v1551 = vunpack.c.h.b16 %v326
    %v1552 = vunpack.c.l.b16 %v327
    %v1553 = vunpack.c.h.b16 %v327
    %v1554 = vunpack.c.l.b16 %v328
    %v1555 = vunpack.c.h.b16 %v328
    %v1556 = vunpack.c.l.b16 %v329
    %v1557 = vunpack.c.h.b16 %v329
    %v1558 = vunpack.c.l.b16 %v330
    %v1559 = vunpack.c.h.b16 %v330
    %v1560 = vunpack.c.l.b16 %v331
    %v1561 = vunpack.c.h.b16 %v331
    %v1562 = vunpack.c.l.b16 %v332
    %v1563 = vunpack.c.h.b16 %v332
    %v1564 = vunpack.c.l.b16 %v333
    %v1565 = vunpack.c.h.b16 %v333
    %v1566 = vunpack.c.l.b16 %v334
    %v1567 = vunpack.c.h.b16 %v334
    %v1568 = vunpack.c.l.b16 %v335
    %v1569 = vunpack.c.h.b16 %v335
    %v1570 = vunpack.c.l.b16 %v336
    %v1571 = vunpack.c.h.b16 %v336
    %v1572 = vunpack.c.l.b16 %v337
    %v1573 = vunpack.c.h.b16 %v337
    %v1574 = vunpack.c.l.b16 %v338
    %v1575 = vunpack.c.h.b16 %v338
    %v1576 = vunpack.c.l.b16 %v339
    %v1577 = vunpack.c.h.b16 %v339
    %v1578 = vunpack.c.l.b16 %v340
    %v1579 = vunpack.c.h.b16 %v340
    %v1580 = vunpack.c.l.b16 %v341
    %v1581 = vunpack.c.h.b16 %v341
    %v1582 = vunpack.c.l.b16 %v342
    %v1583 = vunpack.c.h.b16 %v342
    %v1584 = vunpack.c.l.b16 %v343
    %v1585 = vunpack.c.h.b16 %v343
    %v1586 = vunpack.c.l.b16 %v344
    %v1587 = vunpack.c.h.b16 %v344
    %v1588 = vunpack.c.l.b16 %v345
    %v1589 = vunpack.c.h.b16 %v345
    %v1590 = vunpack.c.l.b16 %v346
    %v1591 = vunpack.c.h.b16 %v346
    %v1592 = vunpack.c.l.b16 %v347
    %v1593 = vunpack.c.h.b16 %v347
    %v1594 = vunpack.c.l.b16 %v348
    %v1595 = vunpack.c.h.b16 %v348
    %v1596 = vunpack.c.l.b16 %v349
    %v1597 = vunpack.c.h.b16 %v349
    %v1598 = vunpack.c.l.b16 %v350
    %v1599 = vunpack.c.h.b16 %v350
    %v1600 = vunpack.c.l.b16 %v351
    %v1601 = vunpack.c.h.b16 %v351
    %v1602 = vunpack.c.l.b16 %v352
    %v1603 = vunpack.c.h.b16 %v352
    %v1604 = vunpack.c.l.b16 %v353
    %v1605 = vunpack.c.h.b16 %v353
    %v1606 = vunpack.c.l.b16 %v354
    %v1607 = vunpack.c.h.b16 %v354
    %v1608 = vunpack.c.l.b16 %v355
    %v1609 = vunpack.c.h.b16 %v355
    %v1610 = vunpack.c.l.b16 %v356
    %v1611 = vunpack.c.h.b16 %v356
    %v1612 = vunpack.c.l.b16 %v357
    %v1613 = vunpack.c.h.b16 %v357
    %v1614 = vunpack.c.l.b16 %v358
    %v1615 = vunpack.c.h.b16 %v358
    %v1616 = vunpack.c.l.b16 %v359
    %v1617 = vunpack.c.h.b16 %v359
    %v1618 = vunpack.c.l.b16 %v360
    %v1619 = vunpack.c.h.b16 %v360
    %v1620 = vunpack.c.l.b16 %v361
    %v1621 = vunpack.c.h.b16 %v361
    %v1622 = vunpack.c.l.b16 %v362
    %v1623 = vunpack.c.h.b16 %v362
    %v1624 = vunpack.c.l.b16 %v363
    %v1625 = vunpack.c.h.b16 %v363
    %v1626 = vunpack.c.l.b16 %v364
    %v1627 = vunpack.c.h.b16 %v364
    %v1628 = vunpack.c.l.b16 %v365
    %v1629 = vunpack.c.h.b16 %v365
    %v1630 = vunpack.c.l.b16 %v366
    %v1631 = vunpack.c.h.b16 %v366
    %v1632 = vunpack.c.l.b16 %v367
    %v1633 = vunpack.c.h.b16 %v367
    %v1634 = vunpack.c.l.b16 %v368
    %v1635 = vunpack.c.h.b16 %v368
    %v1636 = vunpack.c.l.b16 %v369
    %v1637 = vunpack.c.h.b16 %v369
    %v1638 = vunpack.c.l.b16 %v370
    %v1639 = vunpack.c.h.b16 %v370
    %v1640 = vunpack.c.l.b16 %v371
    %v1641 = vunpack.c.h.b16 %v371
    %v1642 = vunpack.c.l.b16 %v372
    %v1643 = vunpack.c.h.b16 %v372
    %v1644 = vunpack.c.l.b16 %v373
    %v1645 = vunpack.c.h.b16 %v373
    %v1646 = vunpack.c.l.b16 %v374
    %v1647 = vunpack.c.h.b16 %v374
    %v1648 = vunpack.c.l.b16 %v375
    %v1649 = vunpack.c.h.b16 %v375
    %v1650 = vunpack.c.l.b16 %v376
    %v1651 = vunpack.c.h.b16 %v376
    %v1652 = vunpack.c.l.b16 %v377
    %v1653 = vunpack.c.h.b16 %v377
    %v1654 = vunpack.c.l.b16 %v378
    %v1655 = vunpack.c.h.b16 %v378
    %v1656 = vunpack.c.l.b16 %v379
    %v1657 = vunpack.c.h.b16 %v379
    %v1658 = vunpack.c.l.b16 %v380
    %v1659 = vunpack.c.h.b16 %v380
    %v1660 = vunpack.c.l.b16 %v381
    %v1661 = vunpack.c.h.b16 %v381
    %v1662 = vunpack.c.l.b16 %v382
    %v1663 = vunpack.c.h.b16 %v382
    %v1664 = vunpack.c.l.b16 %v383
    %v1665 = vunpack.c.h.b16 %v383
    %v1666 = vunpack.c.l.b16 %v384
    %v1667 = vunpack.c.h.b16 %v384
    %v1668 = vunpack.c.l.b16 %v385
    %v1669 = vunpack.c.h.b16 %v385
    %v1670 = vunpack.c.l.b16 %v386
    %v1671 = vunpack.c.h.b16 %v386
    %v1672 = vunpack.c.l.b16 %v387
    %v1673 = vunpack.c.h.b16 %v387
    %v1674 = vunpack.c.l.b16 %v388
    %v1675 = vunpack.c.h.b16 %v388
    %v1676 = vunpack.c.l.b16 %v389
    %v1677 = vunpack.c.h.b16 %v389
    %v1678 = vunpack.c.l.b16 %v390
    %v1679 = vunpack.c.h.b16 %v390
    %v1680 = vunpack.c.l.b16 %v391
    %v1681 = vunpack.c.h.b16 %v391
    %v1682 = vunpack.c.l.b16 %v392
    %v1683 = vunpack.c.h.b16 %v392
    %v1684 = vunpack.c.l.b16 %v393
    %v1685 = vunpack.c.h.b16 %v393
    %v1686 = vunpack.c.l.b16 %v394
    %v1687 = vunpack.c.h.b16 %v394
    %v1688 = vunpack.c.l.b16 %v395
    %v1689 = vunpack.c.h.b16 %v395
    %v1690 = vunpack.c.l.b16 %v396
    %v1691 = vunpack.c.h.b16 %v396
    %v1692 = vunpack.c.l.b16 %v397
    %v1693 = vunpack.c.h.b16 %v397
    %v1694 = vunpack.c.l.b16 %v398
    %v1695 = vunpack.c.h.b16 %v398
    %v1696 = vunpack.c.l.b16 %v399
    %v1697 = vunpack.c.h.b16 %v399
    %v1698 = vunpack.c.l.b16 %v400
    %v1699 = vunpack.c.h.b16 %v400
    %v1700 = vunpack.c.l.b16 %v401
    %v1701 = vunpack.c.h.b16 %v401
    %v1702 = vunpack.c.l.b16 %v402
    %v1703 = vunpack.c.h.b16 %v402
    %v1704 = vunpack.c.l.b16 %v403
    %v1705 = vunpack.c.h.b16 %v403
    %v1706 = vunpack.c.l.b16 %v404
    %v1707 = vunpack.c.h.b16 %v404
    %v1708 = vunpack.c.l.b16 %v405
    %v1709 = vunpack.c.h.b16 %v405
    %v1710 = vunpack.c.l.b16 %v406
    %v1711 = vunpack.c.h.b16 %v406
    %v1712 = vunpack.c.l.b16 %v407
    %v1713 = vunpack.c.h.b16 %v407
    %v1714 = vunpack.c.l.b16 %v408
    %v1715 = vunpack.c.h.b16 %v408
    %v1716 = vunpack.c.l.b16 %v409
    %v1717 = vunpack.c.h.b16 %v409
    %v1718 = vunpack.c.l.b16 %v410
    %v1719 = vunpack.c.h.b16 %v410
    %v1720 = vunpack.c.l.b16 %v411
    %v1721 = vunpack.c.h.b16 %v411
    %v1722 = vunpack.c.l.b16 %v412
    %v1723 = vunpack.c.h.b16 %v412
    %v1724 = vunpack.c.l.b16 %v413
    %v1725 = vunpack.c.h.b16 %v413
    %v1726 = vunpack.c.l.b16 %v414
    %v1727 = vunpack.c.h.b16 %v414
    %v1728 = vunpack.c.l.b16 %v415
    %v1729 = vunpack.c.h.b16 %v415
    %v1730 = vunpack.c.l.b16 %v416
    %v1731 = vunpack.c.h.b16 %v416
    %v1732 = vunpack.c.l.b16 %v417
    %v1733 = vunpack.c.h.b16 %v417
    %v1734 = vunpack.c.l.b16 %v418
    %v1735 = vunpack.c.h.b16 %v418
    %v1736 = vunpack.c.l.b16 %v419
    %v1737 = vunpack.c.h.b16 %v419
    %v1738 = vunpack.c.l.b16 %v420
    %v1739 = vunpack.c.h.b16 %v420
    %v1740 = vunpack.c.l.b16 %v421
    %v1741 = vunpack.c.h.b16 %v421
    %v1742 = vunpack.c.l.b16 %v422
    %v1743 = vunpack.c.h.b16 %v422
    %v1744 = vunpack.c.l.b16 %v423
    %v1745 = vunpack.c.h.b16 %v423
    %v1746 = vunpack.c.l.b16 %v424
    %v1747 = vunpack.c.h.b16 %v424
    %v1748 = vunpack.c.l.b16 %v425
    %v1749 = vunpack.c.h.b16 %v425
    %v1750 = vunpack.c.l.b16 %v426
    %v1751 = vunpack.c.h.b16 %v426
    %v1752 = vunpack.c.l.b16 %v427
    %v1753 = vunpack.c.h.b16 %v427
    %v1754 = vunpack.c.l.b16 %v428
    %v1755 = vunpack.c.h.b16 %v428
    %v1756 = vunpack.c.l.b16 %v429
    %v1757 = vunpack.c.h.b16 %v429
    %v1758 = vunpack.c.l.b16 %v430
    %v1759 = vunpack.c.h.b16 %v430
    %v1760 = vunpack.c.l.b16 %v431
    %v1761 = vunpack.c.h.b16 %v431
    %v1762 = vunpack.c.l.b16 %v432
    %v1763 = vunpack.c.h.b16 %v432
    %v1764 = vunpack.c.l.b16 %v433
    %v1765 = vunpack.c.h.b16 %v433
    %v1766 = vunpack.c.l.b16 %v434
    %v1767 = vunpack.c.h.b16 %v434
    %v1768 = vunpack.c.l.b16 %v435
    %v1769 = vunpack.c.h.b16 %v435
    %v1770 = vunpack.c.l.b16 %v436
    %v1771 = vunpack.c.h.b16 %v436
    %v1772 = vunpack.c.l.b16 %v437
    %v1773 = vunpack.c.h.b16 %v437
    %v1774 = vunpack.c.l.b16 %v438
    %v1775 = vunpack.c.h.b16 %v438
    %v1776 = vunpack.c.l.b16 %v439
    %v1777 = vunpack.c.h.b16 %v439
    %v1778 = vunpack.c.l.b16 %v440
    %v1779 = vunpack.c.h.b16 %v440
    %v1780 = vunpack.c.l.b16 %v441
    %v1781 = vunpack.c.h.b16 %v441
    %v1782 = vunpack.c.l.b16 %v442
    %v1783 = vunpack.c.h.b16 %v442
    %v1784 = vunpack.c.l.b16 %v443
    %v1785 = vunpack.c.h.b16 %v443
    %v1786 = vunpack.c.l.b16 %v444
    %v1787 = vunpack.c.h.b16 %v444
    %v1788 = vunpack.c.l.b16 %v445
    %v1789 = vunpack.c.h.b16 %v445
    %v1790 = vunpack.c.l.b16 %v446
    %v1791 = vunpack.c.h.b16 %v446
    %v1792 = vunpack.c.l.b16 %v447
    %v1793 = vunpack.c.h.b16 %v447
    %v1794 = vunpack.c.l.b16 %v448
    %v1795 = vunpack.c.h.b16 %v448
    %v1796 = vunpack.c.l.b16 %v449
    %v1797 = vunpack.c.h.b16 %v449
    %v1798 = vunpack.c.l.b16 %v450
    %v1799 = vunpack.c.h.b16 %v450
    %v1800 = vunpack.c.l.b16 %v451
    %v1801 = vunpack.c.h.b16 %v451
    %v1802 = vunpack.c.l.b16 %v452
    %v1803 = vunpack.c.h.b16 %v452
    %v1804 = vunpack.c.l.b16 %v453
    %v1805 = vunpack.c.h.b16 %v453
    %v1806 = vunpack.c.l.b16 %v454
    %v1807 = vunpack.c.h.b16 %v454
    %v1808 = vunpack.c.l.b16 %v455
    %v1809 = vunpack.c.h.b16 %v455
    %v1810 = vunpack.c.l.b16 %v456
    %v1811 = vunpack.c.h.b16 %v456
    %v1812 = vunpack.c.l.b16 %v457
    %v1813 = vunpack.c.h.b16 %v457
    %v1814 = vunpack.c.l.b16 %v458
    %v1815 = vunpack.c.h.b16 %v458
    %v1816 = vunpack.c.l.b16 %v459
    %v1817 = vunpack.c.h.b16 %v459
    %v1818 = vunpack.c.l.b16 %v460
    %v1819 = vunpack.c.h.b16 %v460
    %v1820 = vunpack.c.l.b16 %v461
    %v1821 = vunpack.c.h.b16 %v461
    %v1822 = vunpack.c.l.b16 %v462
    %v1823 = vunpack.c.h.b16 %v462
    %v1824 = vunpack.c.l.b16 %v463
    %v1825 = vunpack.c.h.b16 %v463
    %v1826 = vunpack.c.l.b16 %v464
    %v1827 = vunpack.c.h.b16 %v464
    %v1828 = vunpack.c.l.b16 %v465
    %v1829 = vunpack.c.h.b16 %v465
    %v1830 = vunpack.c.l.b16 %v466
    %v1831 = vunpack.c.h.b16 %v466
    %v1832 = vunpack.c.l.b16 %v467
    %v1833 = vunpack.c.h.b16 %v467
    %v1834 = vunpack.c.l.b16 %v468
    %v1835 = vunpack.c.h.b16 %v468
    %v1836 = vunpack.c.l.b16 %v469
    %v1837 = vunpack.c.h.b16 %v469
    %v1838 = vunpack.c.l.b16 %v470
    %v1839 = vunpack.c.h.b16 %v470
    %v1840 = vunpack.c.l.b16 %v471
    %v1841 = vunpack.c.h.b16 %v471
    %v1842 = vunpack.c.l.b16 %v472
    %v1843 = vunpack.c.h.b16 %v472
    %v1844 = vunpack.c.l.b16 %v473
    %v1845 = vunpack.c.h.b16 %v473
    %v1846 = vpack.c.b16 %v1084, %v1078
    %v1847 = vpack.c.b16 %v1085, %v1079
    %v1848 = vpack.c.b16 %v1086, %v1080
    %v1849 = vpack.c.b16 %v1087, %v1081
    %v1850 = vpack.c.b16 %v1088, %v1082
    %v1851 = vpack.c.b16 %v1089, %v1083
    %v1852 = vpack.c.b16 %v1096, %v1090
    %v1853 = vpack.c.b16 %v1097, %v1091
    %v1854 = vpack.c.b16 %v1098, %v1092
    %v1855 = vpack.c.b16 %v1099, %v1093
    %v1856 = vpack.c.b16 %v1100, %v1094
    %v1857 = vpack.c.b16 %v1101, %v1095
    %v1858 = vpack.c.b16 %v1108, %v1102
    %v1859 = vpack.c.b16 %v1109, %v1103
    %v1860 = vpack.c.b16 %v1110, %v1104
    %v1861 = vpack.c.b16 %v1111, %v1105
    %v1862 = vpack.c.b16 %v1112, %v1106
    %v1863 = vpack.c.b16 %v1113, %v1107
    %v1864 = vpack.c.b16 %v1120, %v1114
    %v1865 = vpack.c.b16 %v1121, %v1115
    %v1866 = vpack.c.b16 %v1122, %v1116
    %v1867 = vpack.c.b16 %v1123, %v1117
    %v1868 = vpack.c.b16 %v1124, %v1118
    %v1869 = vpack.c.b16 %v1125, %v1119
    %v1870 = vpack.c.b16 %v1132, %v1126
    %v1871 = vpack.c.b16 %v1133, %v1127
    %v1872 = vpack.c.b16 %v1134, %v1128
    %v1873 = vpack.c.b16 %v1135, %v1129
    %v1874 = vpack.c.b16 %v1136, %v1130
    %v1875 = vpack.c.b16 %v1137, %v1131
    %v1876 = vpack.c.b16 %v1144, %v1138
    %v1877 = vpack.c.b16 %v1145, %v1139
    %v1878 = vpack.c.b16 %v1146, %v1140
    %v1879 = vpack.c.b16 %v1147, %v1141
    %v1880 = vpack.c.b16 %v1148, %v1142
    %v1881 = vpack.c.b16 %v1149, %v1143
    %v1882 = vpack.c.b16 %v1156, %v1150
    %v1883 = vpack.c.b16 %v1157, %v1151
    %v1884 = vpack.c.b16 %v1158, %v1152
    %v1885 = vpack.c.b16 %v1159, %v1153
    %v1886 = vpack.c.b16 %v1160, %v1154
    %v1887 = vpack.c.b16 %v1161, %v1155
    %v1888 = vpack.c.b16 %v1168, %v1162
    %v1889 = vpack.c.b16 %v1169, %v1163
    %v1890 = vpack.c.b16 %v1170, %v1164
    %v1891 = vpack.c.b16 %v1171, %v1165
    %v1892 = vpack.c.b16 %v1172, %v1166
    %v1893 = vpack.c.b16 %v1173, %v1167
    %v1894 = vpack.c.b16 %v1180, %v1174
    %v1895 = vpack.c.b16 %v1181, %v1175
    %v1896 = vpack.c.b16 %v1182, %v1176
    %v1897 = vpack.c.b16 %v1183, %v1177
    %v1898 = vpack.c.b16 %v1184, %v1178
    %v1899 = vpack.c.b16 %v1185, %v1179
    %v1900 = vpack.c.b16 %v1192, %v1186
    %v1901 = vpack.c.b16 %v1193, %v1187
    %v1902 = vpack.c.b16 %v1194, %v1188
    %v1903 = vpack.c.b16 %v1195, %v1189
    %v1904 = vpack.c.b16 %v1196, %v1190
    %v1905 = vpack.c.b16 %v1197, %v1191
    %v1906 = vpack.c.b16 %v1204, %v1198
    %v1907 = vpack.c.b16 %v1205, %v1199
    %v1908 = vpack.c.b16 %v1206, %v1200
    %v1909 = vpack.c.b16 %v1207, %v1201
    %v1910 = vpack.c.b16 %v1208, %v1202
    %v1911 = vpack.c.b16 %v1209, %v1203
    %v1912 = vpack.c.b16 %v1216, %v1210
    %v1913 = vpack.c.b16 %v1217, %v1211
    %v1914 = vpack.c.b16 %v1218, %v1212
    %v1915 = vpack.c.b16 %v1219, %v1213
    %v1916 = vpack.c.b16 %v1220, %v1214
    %v1917 = vpack.c.b16 %v1221, %v1215
    %v1918 = vpack.c.b16 %v1228, %v1222
    %v1919 = vpack.c.b16 %v1229, %v1223
    %v1920 = vpack.c.b16 %v1230, %v1224
    %v1921 = vpack.c.b16 %v1231, %v1225
    %v1922 = vpack.c.b16 %v1232, %v1226
    %v1923 = vpack.c.b16 %v1233, %v1227
    %v1924 = vpack.c.b16 %v1240, %v1234
    %v1925 = vpack.c.b16 %v1241, %v1235
    %v1926 = vpack.c.b16 %v1242, %v1236
    %v1927 = vpack.c.b16 %v1243, %v1237
    %v1928 = vpack.c.b16 %v1244, %v1238
    %v1929 = vpack.c.b16 %v1245, %v1239
    %v1930 = vpack.c.b16 %v1252, %v1246
    %v1931 = vpack.c.b16 %v1253, %v1247
    %v1932 = vpack.c.b16 %v1254, %v1248
    %v1933 = vpack.c.b16 %v1255, %v1249
    %v1934 = vpack.c.b16 %v1256, %v1250
    %v1935 = vpack.c.b16 %v1257, %v1251
    %v1936 = vpack.c.b16 %v1264, %v1258
    %v1937 = vpack.c.b16 %v1265, %v1259
    %v1938 = vpack.c.b16 %v1266, %v1260
    %v1939 = vpack.c.b16 %v1267, %v1261
    %v1940 = vpack.c.b16 %v1268, %v1262
    %v1941 = vpack.c.b16 %v1269, %v1263
    %v1942 = vpack.c.b16 %v1276, %v1270
    %v1943 = vpack.c.b16 %v1277, %v1271
    %v1944 = vpack.c.b16 %v1278, %v1272
    %v1945 = vpack.c.b16 %v1279, %v1273
    %v1946 = vpack.c.b16 %v1280, %v1274
    %v1947 = vpack.c.b16 %v1281, %v1275
    %v1948 = vpack.c.b16 %v1288, %v1282
    %v1949 = vpack.c.b16 %v1289, %v1283
    %v1950 = vpack.c.b16 %v1290, %v1284
    %v1951 = vpack.c.b16 %v1291, %v1285
    %v1952 = vpack.c.b16 %v1292, %v1286
    %v1953 = vpack.c.b16 %v1293, %v1287
    %v1954 = vpack.c.b16 %v1300, %v1294
    %v1955 = vpack.c.b16 %v1301, %v1295
    %v1956 = vpack.c.b16 %v1302, %v1296
    %v1957 = vpack.c.b16 %v1303, %v1297
    %v1958 = vpack.c.b16 %v1304, %v1298
    %v1959 = vpack.c.b16 %v1305, %v1299
    %v1960 = vpack.c.b16 %v1312, %v1306
    %v1961 = vpack.c.b16 %v1313, %v1307
    %v1962 = vpack.c.b16 %v1314, %v1308
    %v1963 = vpack.c.b16 %v1315, %v1309
    %v1964 = vpack.c.b16 %v1316, %v1310
    %v1965 = vpack.c.b16 %v1317, %v1311
    %v1966 = vpack.c.b16 %v1324, %v1318
    %v1967 = vpack.c.b16 %v1325, %v1319
    %v1968 = vpack.c.b16 %v1326, %v1320
    %v1969 = vpack.c.b16 %v1327, %v1321
    %v1970 = vpack.c.b16 %v1328, %v1322
    %v1971 = vpack.c.b16 %v1329, %v1323
    %v1972 = vpack.c.b16 %v1336, %v1330
    %v1973 = vpack.c.b16 %v1337, %v1331
    %v1974 = vpack.c.b16 %v1338, %v1332
    %v1975 = vpack.c.b16 %v1339, %v1333
    %v1976 = vpack.c.b16 %v1340, %v1334
    %v1977 = vpack.c.b16 %v1341, %v1335
    %v1978 = vpack.c.b16 %v1348, %v1342
    %v1979 = vpack.c.b16 %v1349, %v1343
    %v1980 = vpack.c.b16 %v1350, %v1344
    %v1981 = vpack.c.b16 %v1351, %v1345
    %v1982 = vpack.c.b16 %v1352, %v1346
    %v1983 = vpack.c.b16 %v1353, %v1347
    %v1984 = vpack.c.b16 %v1360, %v1354
    %v1985 = vpack.c.b16 %v1361, %v1355
    %v1986 = vpack.c.b16 %v1362, %v1356
    %v1987 = vpack.c.b16 %v1363, %v1357
    %v1988 = vpack.c.b16 %v1364, %v1358
    %v1989 = vpack.c.b16 %v1365, %v1359
    %v1990 = vpack.c.b16 %v1372, %v1366
    %v1991 = vpack.c.b16 %v1373, %v1367
    %v1992 = vpack.c.b16 %v1374, %v1368
    %v1993 = vpack.c.b16 %v1375, %v1369
    %v1994 = vpack.c.b16 %v1376, %v1370
    %v1995 = vpack.c.b16 %v1377, %v1371
    %v1996 = vpack.c.b16 %v1384, %v1378
    %v1997 = vpack.c.b16 %v1385, %v1379
    %v1998 = vpack.c.b16 %v1386, %v1380
    %v1999 = vpack.c.b16 %v1387, %v1381
    %v2000 = vpack.c.b16 %v1388, %v1382
    %v2001 = vpack.c.b16 %v1389, %v1383
    %v2002 = vpack.c.b16 %v1396, %v1390
    %v2003 = vpack.c.b16 %v1397, %v1391
    %v2004 = vpack.c.b16 %v1398, %v1392
    %v2005 = vpack.c.b16 %v1399, %v1393
    %v2006 = vpack.c.b16 %v1400, %v1394
    %v2007 = vpack.c.b16 %v1401, %v1395
    %v2008 = vpack.c.b16 %v1408, %v1402
    %v2009 = vpack.c.b16 %v1409, %v1403
    %v2010 = vpack.c.b16 %v1410, %v1404
    %v2011 = vpack.c.b16 %v1411, %v1405
    %v2012 = vpack.c.b16 %v1412, %v1406
    %v2013 = vpack.c.b16 %v1413, %v1407
    %v2014 = vpack.c.b16 %v1420, %v1414
    %v2015 = vpack.c.b16 %v1421, %v1415
    %v2016 = vpack.c.b16 %v1422, %v1416
    %v2017 = vpack.c.b16 %v1423, %v1417
    %v2018 = vpack.c.b16 %v1424, %v1418
    %v2019 = vpack.c.b16 %v1425, %v1419
    %v2020 = vpack.c.b16 %v1432, %v1426
    %v2021 = vpack.c.b16 %v1433, %v1427
    %v2022 = vpack.c.b16 %v1434, %v1428
    %v2023 = vpack.c.b16 %v1435, %v1429
    %v2024 = vpack.c.b16 %v1436, %v1430
    %v2025 = vpack.c.b16 %v1437, %v1431
    %v2026 = vpack.c.b16 %v1444, %v1438
    %v2027 = vpack.c.b16 %v1445, %v1439
    %v2028 = vpack.c.b16 %v1446, %v1440
    %v2029 = vpack.c.b16 %v1447, %v1441
    %v2030 = vpack.c.b16 %v1448, %v1442
    %v2031 = vpack.c.b16 %v1449, %v1443
    %v2032 = vpack.c.b16 %v1456, %v1450
    %v2033 = vpack.c.b16 %v1457, %v1451
    %v2034 = vpack.c.b16 %v1458, %v1452
    %v2035 = vpack.c.b16 %v1459, %v1453
    %v2036 = vpack.c.b16 %v1460, %v1454
    %v2037 = vpack.c.b16 %v1461, %v1455
    %v2038 = vpack.c.b16 %v1468, %v1462
    %v2039 = vpack.c.b16 %v1469, %v1463
    %v2040 = vpack.c.b16 %v1470, %v1464
    %v2041 = vpack.c.b16 %v1471, %v1465
    %v2042 = vpack.c.b16 %v1472, %v1466
    %v2043 = vpack.c.b16 %v1473, %v1467
    %v2044 = vpack.c.b16 %v1480, %v1474
    %v2045 = vpack.c.b16 %v1481, %v1475
    %v2046 = vpack.c.b16 %v1482, %v1476
    %v2047 = vpack.c.b16 %v1483, %v1477
    %v2048 = vpack.c.b16 %v1484, %v1478
    %v2049 = vpack.c.b16 %v1485, %v1479
    %v2050 = vpack.c.b16 %v1492, %v1486
    %v2051 = vpack.c.b16 %v1493, %v1487
    %v2052 = vpack.c.b16 %v1494, %v1488
    %v2053 = vpack.c.b16 %v1495, %v1489
    %v2054 = vpack.c.b16 %v1496, %v1490
    %v2055 = vpack.c.b16 %v1497, %v1491
    %v2056 = vpack.c.b16 %v1504, %v1498
    %v2057 = vpack.c.b16 %v1505, %v1499
    %v2058 = vpack.c.b16 %v1506, %v1500
    %v2059 = vpack.c.b16 %v1507, %v1501
    %v2060 = vpack.c.b16 %v1508, %v1502
    %v2061 = vpack.c.b16 %v1509, %v1503
    %v2062 = vpack.c.b16 %v1516, %v1510
    %v2063 = vpack.c.b16 %v1517, %v1511
    %v2064 = vpack.c.b16 %v1518, %v1512
    %v2065 = vpack.c.b16 %v1519, %v1513
    %v2066 = vpack.c.b16 %v1520, %v1514
    %v2067 = vpack.c.b16 %v1521, %v1515
    %v2068 = vpack.c.b16 %v1528, %v1522
    %v2069 = vpack.c.b16 %v1529, %v1523
    %v2070 = vpack.c.b16 %v1530, %v1524
    %v2071 = vpack.c.b16 %v1531, %v1525
    %v2072 = vpack.c.b16 %v1532, %v1526
    %v2073 = vpack.c.b16 %v1533, %v1527
    %v2074 = vpack.c.b16 %v1540, %v1534
    %v2075 = vpack.c.b16 %v1541, %v1535
    %v2076 = vpack.c.b16 %v1542, %v1536
    %v2077 = vpack.c.b16 %v1543, %v1537
    %v2078 = vpack.c.b16 %v1544, %v1538
    %v2079 = vpack.c.b16 %v1545, %v1539
    %v2080 = vpack.c.b16 %v1552, %v1546
    %v2081 = vpack.c.b16 %v1553, %v1547
    %v2082 = vpack.c.b16 %v1554, %v1548
    %v2083 = vpack.c.b16 %v1555, %v1549
    %v2084 = vpack.c.b16 %v1556, %v1550
    %v2085 = vpack.c.b16 %v1557, %v1551
    %v2086 = vpack.c.b16 %v1564, %v1558
    %v2087 = vpack.c.b16 %v1565, %v1559
    %v2088 = vpack.c.b16 %v1566, %v1560
    %v2089 = vpack.c.b16 %v1567, %v1561
    %v2090 = vpack.c.b16 %v1568, %v1562
    %v2091 = vpack.c.b16 %v1569, %v1563
    %v2092 = vpack.c.b16 %v1576, %v1570
    %v2093 = vpack.c.b16 %v1577, %v1571
    %v2094 = vpack.c.b16 %v1578, %v1572
    %v2095 = vpack.c.b16 %v1579, %v1573
    %v2096 = vpack.c.b16 %v1580, %v1574
    %v2097 = vpack.c.b16 %v1581, %v1575
    %v2098 = vpack.c.b16 %v1588, %v1582
    %v2099 = vpack.c.b16 %v1589, %v1583
    %v2100 = vpack.c.b16 %v1590, %v1584
    %v2101 = vpack.c.b16 %v1591, %v1585
    %v2102 = vpack.c.b16 %v1592, %v1586
    %v2103 = vpack.c.b16 %v1593, %v1587
    %v2104 = vpack.c.b16 %v1600, %v1594
    %v2105 = vpack.c.b16 %v1601, %v1595
    %v2106 = vpack.c.b16 %v1602, %v1596
    %v2107 = vpack.c.b16 %v1603, %v1597
    %v2108 = vpack.c.b16 %v1604, %v1598
    %v2109 = vpack.c.b16 %v1605, %v1599
    %v2110 = vpack.c.b16 %v1612, %v1606
    %v2111 = vpack.c.b16 %v1613, %v1607
    %v2112 = vpack.c.b16 %v1614, %v1608
    %v2113 = vpack.c.b16 %v1615, %v1609
    %v2114 = vpack.c.b16 %v1616, %v1610
    %v2115 = vpack.c.b16 %v1617, %v1611
    %v2116 = vpack.c.b16 %v1624, %v1618
    %v2117 = vpack.c.b16 %v1625, %v1619
    %v2118 = vpack.c.b16 %v1626, %v1620
    %v2119 = vpack.c.b16 %v1627, %v1621
    %v2120 = vpack.c.b16 %v1628, %v1622
    %v2121 = vpack.c.b16 %v1629, %v1623
    %v2122 = vpack.c.b16 %v1636, %v1630
    %v2123 = vpack.c.b16 %v1637, %v1631
    %v2124 = vpack.c.b16 %v1638, %v1632
    %v2125 = vpack.c.b16 %v1639, %v1633
    %v2126 = vpack.c.b16 %v1640, %v1634
    %v2127 = vpack.c.b16 %v1641, %v1635
    %v2128 = vpack.c.b16 %v1648, %v1642
    %v2129 = vpack.c.b16 %v1649, %v1643
    %v2130 = vpack.c.b16 %v1650, %v1644
    %v2131 = vpack.c.b16 %v1651, %v1645
    %v2132 = vpack.c.b16 %v1652, %v1646
    %v2133 = vpack.c.b16 %v1653, %v1647
    %v2134 = vpack.c.b16 %v1660, %v1654
    %v2135 = vpack.c.b16 %v1661, %v1655
    %v2136 = vpack.c.b16 %v1662, %v1656
    %v2137 = vpack.c.b16 %v1663, %v1657
    %v2138 = vpack.c.b16 %v1664, %v1658
    %v2139 = vpack.c.b16 %v1665, %v1659
    %v2140 = vpack.c.b16 %v1672, %v1666
    %v2141 = vpack.c.b16 %v1673, %v1667
    %v2142 = vpack.c.b16 %v1674, %v1668
    %v2143 = vpack.c.b16 %v1675, %v1669
    %v2144 = vpack.c.b16 %v1676, %v1670
    %v2145 = vpack.c.b16 %v1677, %v1671
    %v2146 = vpack.c.b16 %v1684, %v1678
    %v2147 = vpack.c.b16 %v1685, %v1679
    %v2148 = vpack.c.b16 %v1686, %v1680
    %v2149 = vpack.c.b16 %v1687, %v1681
    %v2150 = vpack.c.b16 %v1688, %v1682
    %v2151 = vpack.c.b16 %v1689, %v1683
    %v2152 = vpack.c.b16 %v1696, %v1690
    %v2153 = vpack.c.b16 %v1697, %v1691
    %v2154 = vpack.c.b16 %v1698, %v1692
    %v2155 = vpack.c.b16 %v1699, %v1693
    %v2156 = vpack.c.b16 %v1700, %v1694
    %v2157 = vpack.c.b16 %v1701, %v1695
    %v2158 = vpack.c.b16 %v1708, %v1702
    %v2159 = vpack.c.b16 %v1709, %v1703
    %v2160 = vpack.c.b16 %v1710, %v1704
    %v2161 = vpack.c.b16 %v1711, %v1705
    %v2162 = vpack.c.b16 %v1712, %v1706
    %v2163 = vpack.c.b16 %v1713, %v1707
    %v2164 = vpack.c.b16 %v1720, %v1714
    %v2165 = vpack.c.b16 %v1721, %v1715
    %v2166 = vpack.c.b16 %v1722, %v1716
    %v2167 = vpack.c.b16 %v1723, %v1717
    %v2168 = vpack.c.b16 %v1724, %v1718
    %v2169 = vpack.c.b16 %v1725, %v1719
    %v2170 = vpack.c.b16 %v1732, %v1726
    %v2171 = vpack.c.b16 %v1733, %v1727
    %v2172 = vpack.c.b16 %v1734, %v1728
    %v2173 = vpack.c.b16 %v1735, %v1729
    %v2174 = vpack.c.b16 %v1736, %v1730
    %v2175 = vpack.c.b16 %v1737, %v1731
    %v2176 = vpack.c.b16 %v1744, %v1738
    %v2177 = vpack.c.b16 %v1745, %v1739
    %v2178 = vpack.c.b16 %v1746, %v1740
    %v2179 = vpack.c.b16 %v1747, %v1741
    %v2180 = vpack.c.b16 %v1748, %v1742
    %v2181 = vpack.c.b16 %v1749, %v1743
    %v2182 = vpack.c.b16 %v1756, %v1750
    %v2183 = vpack.c.b16 %v1757, %v1751
    %v2184 = vpack.c.b16 %v1758, %v1752
    %v2185 = vpack.c.b16 %v1759, %v1753
    %v2186 = vpack.c.b16 %v1760, %v1754
    %v2187 = vpack.c.b16 %v1761, %v1755
    %v2188 = vpack.c.b16 %v1768, %v1762
    %v2189 = vpack.c.b16 %v1769, %v1763
    %v2190 = vpack.c.b16 %v1770, %v1764
    %v2191 = vpack.c.b16 %v1771, %v1765
    %v2192 = vpack.c.b16 %v1772, %v1766
    %v2193 = vpack.c.b16 %v1773, %v1767
    %v2194 = vpack.c.b16 %v1780, %v1774
    %v2195 = vpack.c.b16 %v1781, %v1775
    %v2196 = vpack.c.b16 %v1782, %v1776
    %v2197 = vpack.c.b16 %v1783, %v1777
    %v2198 = vpack.c.b16 %v1784, %v1778
    %v2199 = vpack.c.b16 %v1785, %v1779
    %v2200 = vpack.c.b16 %v1792, %v1786
    %v2201 = vpack.c.b16 %v1793, %v1787
    %v2202 = vpack.c.b16 %v1794, %v1788
    %v2203 = vpack.c.b16 %v1795, %v1789
    %v2204 = vpack.c.b16 %v1796, %v1790
    %v2205 = vpack.c.b16 %v1797, %v1791
    %v2206 = vpack.c.b16 %v1804, %v1798
    %v2207 = vpack.c.b16 %v1805, %v1799
    %v2208 = vpack.c.b16 %v1806, %v1800
    %v2209 = vpack.c.b16 %v1807, %v1801
    %v2210 = vpack.c.b16 %v1808, %v1802
    %v2211 = vpack.c.b16 %v1809, %v1803
    %v2212 = vpack.c.b16 %v1816, %v1810
    %v2213 = vpack.c.b16 %v1817, %v1811
    %v2214 = vpack.c.b16 %v1818, %v1812
    %v2215 = vpack.c.b16 %v1819, %v1813
    %v2216 = vpack.c.b16 %v1820, %v1814
    %v2217 = vpack.c.b16 %v1821, %v1815
    %v2218 = vpack.c.b16 %v1828, %v1822
    %v2219 = vpack.c.b16 %v1829, %v1823
    %v2220 = vpack.c.b16 %v1830, %v1824
    %v2221 = vpack.c.b16 %v1831, %v1825
    %v2222 = vpack.c.b16 %v1832, %v1826
    %v2223 = vpack.c.b16 %v1833, %v1827
    %v2224 = vpack.c.b16 %v1840, %v1834
    %v2225 = vpack.c.b16 %v1841, %v1835
    %v2226 = vpack.c.b16 %v1842, %v1836
    %v2227 = vpack.c.b16 %v1843, %v1837
    %v2228 = vpack.c.b16 %v1844, %v1838
    %v2229 = vpack.c.b16 %v1845, %v1839
    %2614 = vmatprep.subr.bf16.mxu0 %v1889
    %2615 = vmatpush1.bf16.msra.mxu0 %v1888
    %2616 = vmatprep.subr.bf16.mxu0 %v1883
    %2617 = vmatpush1.bf16.msra.mxu0 %v1882
    %2618 = vmatprep.subr.bf16.mxu0 %v1877
    %2619 = vmatpush1.bf16.msra.mxu0 %v1876
    %2620 = vmatprep.subr.bf16.mxu0 %v1871
    %2621 = vmatpush1.bf16.msra.mxu0 %v1870
    %2622 = vmatprep.subr.bf16.mxu0 %v1865
    %2623 = vmatpush1.bf16.msra.mxu0 %v1864
    %2624 = vmatprep.subr.bf16.mxu0 %v1859
    %2625 = vmatpush1.bf16.msra.mxu0 %v1858
    %2626 = vmatprep.subr.bf16.mxu0 %v1853
    %2627 = vmatpush1.bf16.msra.mxu0 %v1852
    %2628 = vmatprep.subr.bf16.mxu0 %v1847
    %2629 = vmatpush1.bf16.msra.mxu0 %v1846
    %2630 = vmatprep.subr.bf16.mxu0 %v1937
    %2631 = vmatpush2.bf16.msra.mxu0 %v1936
    %2632 = vmatprep.subr.bf16.mxu0 %v1931
    %2633 = vmatpush2.bf16.msra.mxu0 %v1930
    %2634 = vmatprep.subr.bf16.mxu0 %v1925
    %2635 = vmatpush2.bf16.msra.mxu0 %v1924
    %2636 = vmatprep.subr.bf16.mxu0 %v1919
    %2637 = vmatpush2.bf16.msra.mxu0 %v1918
    %2638 = vmatprep.subr.bf16.mxu0 %v1913
    %2639 = vmatpush2.bf16.msra.mxu0 %v1912
    %2640 = vmatprep.subr.bf16.mxu0 %v1907
    %2641 = vmatpush2.bf16.msra.mxu0 %v1906
    %2642 = vmatprep.subr.bf16.mxu0 %v1901
    %2643 = vmatpush2.bf16.msra.mxu0 %v1900
    %2644 = vmatprep.subr.bf16.mxu0 %v1895
    %2645 = vmatpush2.bf16.msra.mxu0 %v1894
    %2646 = vmatprep.mubr.bf16.mxu0 %v615
    %2647 = vmatmul.mubr.bf16.gmra.mxu0 %v614
    %v2648 = vpop.f32.mrf.mxu0
    %v2649 = vadd.f32 %v479, %v2648
    %v2650 = vpop.f32.mrf.mxu0
    %v2651 = vadd.f32 %v483, %v2650
    %v2652 = vpop.f32.mrf.mxu0
    %v2653 = vadd.f32 %v479, %v2652
    %v2654 = vpop.f32.mrf.mxu0
    %v2655 = vadd.f32 %v483, %v2654
    %2656 = vmatprep.mubr.bf16.mxu0 %v623
    %2657 = vmatmul.mubr.bf16.gmra.mxu0 %v622
    %v2658 = vpop.f32.mrf.mxu0
    %v2659 = vadd.f32 %v479, %v2658
    %v2660 = vpop.f32.mrf.mxu0
    %v2661 = vadd.f32 %v483, %v2660
    %v2662 = vpop.f32.mrf.mxu0
    %v2663 = vadd.f32 %v479, %v2662
    %v2664 = vpop.f32.mrf.mxu0
    %v2665 = vadd.f32 %v483, %v2664
    %2666 = vmatprep.mubr.bf16.mxu0 %v631
    %2667 = vmatmul.mubr.bf16.gmra.mxu0 %v630
    %v2668 = vpop.f32.mrf.mxu0
    %v2669 = vadd.f32 %v479, %v2668
    %v2670 = vpop.f32.mrf.mxu0
    %v2671 = vadd.f32 %v483, %v2670
    %v2672 = vpop.f32.mrf.mxu0
    %v2673 = vadd.f32 %v479, %v2672
    %v2674 = vpop.f32.mrf.mxu0
    %v2675 = vadd.f32 %v483, %v2674
    %2676 = vmatprep.mubr.bf16.mxu0 %v639
    %2677 = vmatmul.mubr.bf16.gmra.mxu0 %v638
    %v2678 = vpop.f32.mrf.mxu0
    %v2679 = vadd.f32 %v479, %v2678
    %v2680 = vpop.f32.mrf.mxu0
    %v2681 = vadd.f32 %v483, %v2680
    %v2682 = vpop.f32.mrf.mxu0
    %v2683 = vadd.f32 %v479, %v2682
    %v2684 = vpop.f32.mrf.mxu0
    %v2685 = vadd.f32 %v483, %v2684
    %2686 = vmatprep.mubr.bf16.mxu0 %v647
    %2687 = vmatmul.mubr.bf16.gmra.mxu0 %v646
    %v2688 = vpop.f32.mrf.mxu0
    %v2689 = vadd.f32 %v479, %v2688
    %v2690 = vpop.f32.mrf.mxu0
    %v2691 = vadd.f32 %v483, %v2690
    %v2692 = vpop.f32.mrf.mxu0
    %v2693 = vpop.f32.mrf.mxu0
    %2694 = vdwg.mxu0
    %2695 = vmatprep.subr.bf16.mxu0 %v1985
    %2696 = vmatpush1.bf16.msra.mxu0 %v1984
    %2697 = vmatprep.subr.bf16.mxu0 %v1979
    %2698 = vmatpush1.bf16.msra.mxu0 %v1978
    %2699 = vmatprep.subr.bf16.mxu0 %v1973
    %2700 = vmatpush1.bf16.msra.mxu0 %v1972
    %2701 = vmatprep.subr.bf16.mxu0 %v1967
    %2702 = vmatpush1.bf16.msra.mxu0 %v1966
    %2703 = vmatprep.subr.bf16.mxu0 %v1961
    %2704 = vmatpush1.bf16.msra.mxu0 %v1960
    %2705 = vmatprep.subr.bf16.mxu0 %v1955
    %2706 = vmatpush1.bf16.msra.mxu0 %v1954
    %2707 = vmatprep.subr.bf16.mxu0 %v1949
    %2708 = vmatpush1.bf16.msra.mxu0 %v1948
    %2709 = vmatprep.subr.bf16.mxu0 %v1943
    %2710 = vmatpush1.bf16.msra.mxu0 %v1942
    %2711 = vmatprep.subr.bf16.mxu0 %v2033
    %2712 = vmatpush2.bf16.msra.mxu0 %v2032
    %2713 = vmatprep.subr.bf16.mxu0 %v2027
    %2714 = vmatpush2.bf16.msra.mxu0 %v2026
    %2715 = vmatprep.subr.bf16.mxu0 %v2021
    %2716 = vmatpush2.bf16.msra.mxu0 %v2020
    %2717 = vmatprep.subr.bf16.mxu0 %v2015
    %2718 = vmatpush2.bf16.msra.mxu0 %v2014
    %2719 = vmatprep.subr.bf16.mxu0 %v2009
    %2720 = vmatpush2.bf16.msra.mxu0 %v2008
    %2721 = vmatprep.subr.bf16.mxu0 %v2003
    %2722 = vmatpush2.bf16.msra.mxu0 %v2002
    %2723 = vmatprep.subr.bf16.mxu0 %v1997
    %2724 = vmatpush2.bf16.msra.mxu0 %v1996
    %2725 = vmatprep.subr.bf16.mxu0 %v1991
    %2726 = vmatpush2.bf16.msra.mxu0 %v1990
    %2727 = vmatprep.mubr.bf16.mxu0 %v617
    %2728 = vmatmul.mubr.bf16.gmra.mxu0 %v616
    %v2729 = vpop.f32.mrf.mxu0
    %v2730 = vadd.f32 %v2649, %v2729
    %v2731 = vpop.f32.mrf.mxu0
    %v2732 = vadd.f32 %v2651, %v2731
    %v2733 = vpop.f32.mrf.mxu0
    %v2734 = vadd.f32 %v2653, %v2733
    %v2735 = vpop.f32.mrf.mxu0
    %v2736 = vadd.f32 %v2655, %v2735
    %2737 = vmatprep.mubr.bf16.mxu0 %v625
    %2738 = vmatmul.mubr.bf16.gmra.mxu0 %v624
    %v2739 = vpop.f32.mrf.mxu0
    %v2740 = vadd.f32 %v2659, %v2739
    %v2741 = vpop.f32.mrf.mxu0
    %v2742 = vadd.f32 %v2661, %v2741
    %v2743 = vpop.f32.mrf.mxu0
    %v2744 = vadd.f32 %v2663, %v2743
    %v2745 = vpop.f32.mrf.mxu0
    %v2746 = vadd.f32 %v2665, %v2745
    %2747 = vmatprep.mubr.bf16.mxu0 %v633
    %2748 = vmatmul.mubr.bf16.gmra.mxu0 %v632
    %v2749 = vpop.f32.mrf.mxu0
    %v2750 = vadd.f32 %v2669, %v2749
    %v2751 = vpop.f32.mrf.mxu0
    %v2752 = vadd.f32 %v2671, %v2751
    %v2753 = vpop.f32.mrf.mxu0
    %v2754 = vadd.f32 %v2673, %v2753
    %v2755 = vpop.f32.mrf.mxu0
    %v2756 = vadd.f32 %v2675, %v2755
    %2757 = vmatprep.mubr.bf16.mxu0 %v641
    %2758 = vmatmul.mubr.bf16.gmra.mxu0 %v640
    %v2759 = vpop.f32.mrf.mxu0
    %v2760 = vadd.f32 %v2679, %v2759
    %v2761 = vpop.f32.mrf.mxu0
    %v2762 = vadd.f32 %v2681, %v2761
    %v2763 = vpop.f32.mrf.mxu0
    %v2764 = vadd.f32 %v2683, %v2763
    %v2765 = vpop.f32.mrf.mxu0
    %v2766 = vadd.f32 %v2685, %v2765
    %2767 = vmatprep.mubr.bf16.mxu0 %v649
    %2768 = vmatmul.mubr.bf16.gmra.mxu0 %v648
    %v2769 = vpop.f32.mrf.mxu0
    %v2770 = vadd.f32 %v2689, %v2769
    %v2771 = vpop.f32.mrf.mxu0
    %v2772 = vadd.f32 %v2691, %v2771
    %v2773 = vpop.f32.mrf.mxu0
    %v2774 = vpop.f32.mrf.mxu0
    %2775 = vdwg.mxu0
    %2776 = vmatprep.subr.bf16.mxu0 %v2081
    %2777 = vmatpush1.bf16.msra.mxu0 %v2080
    %2778 = vmatprep.subr.bf16.mxu0 %v2075
    %2779 = vmatpush1.bf16.msra.mxu0 %v2074
    %2780 = vmatprep.subr.bf16.mxu0 %v2069
    %2781 = vmatpush1.bf16.msra.mxu0 %v2068
    %2782 = vmatprep.subr.bf16.mxu0 %v2063
    %2783 = vmatpush1.bf16.msra.mxu0 %v2062
    %2784 = vmatprep.subr.bf16.mxu0 %v2057
    %2785 = vmatpush1.bf16.msra.mxu0 %v2056
    %2786 = vmatprep.subr.bf16.mxu0 %v2051
    %2787 = vmatpush1.bf16.msra.mxu0 %v2050
    %2788 = vmatprep.subr.bf16.mxu0 %v2045
    %2789 = vmatpush1.bf16.msra.mxu0 %v2044
    %2790 = vmatprep.subr.bf16.mxu0 %v2039
    %2791 = vmatpush1.bf16.msra.mxu0 %v2038
    %2792 = vmatprep.subr.bf16.mxu0 %v2129
    %2793 = vmatpush2.bf16.msra.mxu0 %v2128
    %2794 = vmatprep.subr.bf16.mxu0 %v2123
    %2795 = vmatpush2.bf16.msra.mxu0 %v2122
    %2796 = vmatprep.subr.bf16.mxu0 %v2117
    %2797 = vmatpush2.bf16.msra.mxu0 %v2116
    %2798 = vmatprep.subr.bf16.mxu0 %v2111
    %2799 = vmatpush2.bf16.msra.mxu0 %v2110
    %2800 = vmatprep.subr.bf16.mxu0 %v2105
    %2801 = vmatpush2.bf16.msra.mxu0 %v2104
    %2802 = vmatprep.subr.bf16.mxu0 %v2099
    %2803 = vmatpush2.bf16.msra.mxu0 %v2098
    %2804 = vmatprep.subr.bf16.mxu0 %v2093
    %2805 = vmatpush2.bf16.msra.mxu0 %v2092
    %2806 = vmatprep.subr.bf16.mxu0 %v2087
    %2807 = vmatpush2.bf16.msra.mxu0 %v2086
    %2808 = vmatprep.mubr.bf16.mxu0 %v619
    %2809 = vmatmul.mubr.bf16.gmra.mxu0 %v618
    %v2810 = vpop.f32.mrf.mxu0
    %v2811 = vadd.f32 %v2730, %v2810
    %v2812 = vpop.f32.mrf.mxu0
    %v2813 = vadd.f32 %v2732, %v2812
    %v2814 = vpop.f32.mrf.mxu0
    %v2815 = vadd.f32 %v2734, %v2814
    %v2816 = vpop.f32.mrf.mxu0
    %v2817 = vadd.f32 %v2736, %v2816
    %2818 = vmatprep.mubr.bf16.mxu0 %v627
    %2819 = vmatmul.mubr.bf16.gmra.mxu0 %v626
    %v2820 = vpop.f32.mrf.mxu0
    %v2821 = vadd.f32 %v2740, %v2820
    %v2822 = vpop.f32.mrf.mxu0
    %v2823 = vadd.f32 %v2742, %v2822
    %v2824 = vpop.f32.mrf.mxu0
    %v2825 = vadd.f32 %v2744, %v2824
    %v2826 = vpop.f32.mrf.mxu0
    %v2827 = vadd.f32 %v2746, %v2826
    %2828 = vmatprep.mubr.bf16.mxu0 %v635
    %2829 = vmatmul.mubr.bf16.gmra.mxu0 %v634
    %v2830 = vpop.f32.mrf.mxu0
    %v2831 = vadd.f32 %v2750, %v2830
    %v2832 = vpop.f32.mrf.mxu0
    %v2833 = vadd.f32 %v2752, %v2832
    %v2834 = vpop.f32.mrf.mxu0
    %v2835 = vadd.f32 %v2754, %v2834
    %v2836 = vpop.f32.mrf.mxu0
    %v2837 = vadd.f32 %v2756, %v2836
    %2838 = vmatprep.mubr.bf16.mxu0 %v643
    %2839 = vmatmul.mubr.bf16.gmra.mxu0 %v642
    %v2840 = vpop.f32.mrf.mxu0
    %v2841 = vadd.f32 %v2760, %v2840
    %v2842 = vpop.f32.mrf.mxu0
    %v2843 = vadd.f32 %v2762, %v2842
    %v2844 = vpop.f32.mrf.mxu0
    %v2845 = vadd.f32 %v2764, %v2844
    %v2846 = vpop.f32.mrf.mxu0
    %v2847 = vadd.f32 %v2766, %v2846
    %2848 = vmatprep.mubr.bf16.mxu0 %v651
    %2849 = vmatmul.mubr.bf16.gmra.mxu0 %v650
    %v2850 = vpop.f32.mrf.mxu0
    %v2851 = vadd.f32 %v2770, %v2850
    %v2852 = vpop.f32.mrf.mxu0
    %v2853 = vadd.f32 %v2772, %v2852
    %v2854 = vpop.f32.mrf.mxu0
    %v2855 = vpop.f32.mrf.mxu0
    %2856 = vdwg.mxu0
    %2857 = vmatprep.subr.bf16.mxu0 %v2177
    %2858 = vmatpush1.bf16.msra.mxu0 %v2176
    %2859 = vmatprep.subr.bf16.mxu0 %v2171
    %2860 = vmatpush1.bf16.msra.mxu0 %v2170
    %2861 = vmatprep.subr.bf16.mxu0 %v2165
    %2862 = vmatpush1.bf16.msra.mxu0 %v2164
    %2863 = vmatprep.subr.bf16.mxu0 %v2159
    %2864 = vmatpush1.bf16.msra.mxu0 %v2158
    %2865 = vmatprep.subr.bf16.mxu0 %v2153
    %2866 = vmatpush1.bf16.msra.mxu0 %v2152
    %2867 = vmatprep.subr.bf16.mxu0 %v2147
    %2868 = vmatpush1.bf16.msra.mxu0 %v2146
    %2869 = vmatprep.subr.bf16.mxu0 %v2141
    %2870 = vmatpush1.bf16.msra.mxu0 %v2140
    %2871 = vmatprep.subr.bf16.mxu0 %v2135
    %2872 = vmatpush1.bf16.msra.mxu0 %v2134
    %2873 = vmatprep.subr.bf16.mxu0 %v2225
    %2874 = vmatpush2.bf16.msra.mxu0 %v2224
    %2875 = vmatprep.subr.bf16.mxu0 %v2219
    %2876 = vmatpush2.bf16.msra.mxu0 %v2218
    %2877 = vmatprep.subr.bf16.mxu0 %v2213
    %2878 = vmatpush2.bf16.msra.mxu0 %v2212
    %2879 = vmatprep.subr.bf16.mxu0 %v2207
    %2880 = vmatpush2.bf16.msra.mxu0 %v2206
    %2881 = vmatprep.subr.bf16.mxu0 %v2201
    %2882 = vmatpush2.bf16.msra.mxu0 %v2200
    %2883 = vmatprep.subr.bf16.mxu0 %v2195
    %2884 = vmatpush2.bf16.msra.mxu0 %v2194
    %2885 = vmatprep.subr.bf16.mxu0 %v2189
    %2886 = vmatpush2.bf16.msra.mxu0 %v2188
    %2887 = vmatprep.subr.bf16.mxu0 %v2183
    %2888 = vmatpush2.bf16.msra.mxu0 %v2182
    %2889 = vmatprep.mubr.bf16.mxu0 %v621
    %2890 = vmatmul.mubr.bf16.gmra.mxu0 %v620
    %v2891 = vpop.f32.mrf.mxu0
    %v2892 = vadd.f32 %v2811, %v2891
    %v2893 = vpop.f32.mrf.mxu0
    %v2894 = vadd.f32 %v2813, %v2893
    %v2895 = vpop.f32.mrf.mxu0
    %v2896 = vadd.f32 %v2815, %v2895
    %v2897 = vpop.f32.mrf.mxu0
    %v2898 = vadd.f32 %v2817, %v2897
    %2899 = vmatprep.mubr.bf16.mxu0 %v629
    %2900 = vmatmul.mubr.bf16.gmra.mxu0 %v628
    %v2901 = vpop.f32.mrf.mxu0
    %v2902 = vadd.f32 %v2821, %v2901
    %v2903 = vpop.f32.mrf.mxu0
    %v2904 = vadd.f32 %v2823, %v2903
    %v2905 = vpop.f32.mrf.mxu0
    %v2906 = vadd.f32 %v2825, %v2905
    %v2907 = vpop.f32.mrf.mxu0
    %v2908 = vadd.f32 %v2827, %v2907
    %2909 = vmatprep.mubr.bf16.mxu0 %v637
    %2910 = vmatmul.mubr.bf16.gmra.mxu0 %v636
    %v2911 = vpop.f32.mrf.mxu0
    %v2912 = vadd.f32 %v2831, %v2911
    %v2913 = vpop.f32.mrf.mxu0
    %v2914 = vadd.f32 %v2833, %v2913
    %v2915 = vpop.f32.mrf.mxu0
    %v2916 = vadd.f32 %v2835, %v2915
    %v2917 = vpop.f32.mrf.mxu0
    %v2918 = vadd.f32 %v2837, %v2917
    %2919 = vmatprep.mubr.bf16.mxu0 %v645
    %2920 = vmatmul.mubr.bf16.gmra.mxu0 %v644
    %v2921 = vpop.f32.mrf.mxu0
    %v2922 = vadd.f32 %v2841, %v2921
    %v2923 = vpop.f32.mrf.mxu0
    %v2924 = vadd.f32 %v2843, %v2923
    %v2925 = vpop.f32.mrf.mxu0
    %v2926 = vadd.f32 %v2845, %v2925
    %v2927 = vpop.f32.mrf.mxu0
    %v2928 = vadd.f32 %v2847, %v2927
    %2929 = vmatprep.mubr.bf16.mxu0 %v653
    %2930 = vmatmul.mubr.bf16.gmra.mxu0 %v652
    %v2931 = vpop.f32.mrf.mxu0
    %v2932 = vadd.f32 %v2851, %v2931
    %v2933 = vpop.f32.mrf.mxu0
    %v2934 = vadd.f32 %v2853, %v2933
    %v2935 = vpop.f32.mrf.mxu0
    %v2936 = vpop.f32.mrf.mxu0
    %2937 = vdwg.mxu0
    %2938 = vmatprep.subr.bf16.mxu0 %v1891
    %2939 = vmatpush1.bf16.msra.mxu0 %v1890
    %2940 = vmatprep.subr.bf16.mxu0 %v1885
    %2941 = vmatpush1.bf16.msra.mxu0 %v1884
    %2942 = vmatprep.subr.bf16.mxu0 %v1879
    %2943 = vmatpush1.bf16.msra.mxu0 %v1878
    %2944 = vmatprep.subr.bf16.mxu0 %v1873
    %2945 = vmatpush1.bf16.msra.mxu0 %v1872
    %2946 = vmatprep.subr.bf16.mxu0 %v1867
    %2947 = vmatpush1.bf16.msra.mxu0 %v1866
    %2948 = vmatprep.subr.bf16.mxu0 %v1861
    %2949 = vmatpush1.bf16.msra.mxu0 %v1860
    %2950 = vmatprep.subr.bf16.mxu0 %v1855
    %2951 = vmatpush1.bf16.msra.mxu0 %v1854
    %2952 = vmatprep.subr.bf16.mxu0 %v1849
    %2953 = vmatpush1.bf16.msra.mxu0 %v1848
    %2954 = vmatprep.subr.bf16.mxu0 %v1939
    %2955 = vmatpush2.bf16.msra.mxu0 %v1938
    %2956 = vmatprep.subr.bf16.mxu0 %v1933
    %2957 = vmatpush2.bf16.msra.mxu0 %v1932
    %2958 = vmatprep.subr.bf16.mxu0 %v1927
    %2959 = vmatpush2.bf16.msra.mxu0 %v1926
    %2960 = vmatprep.subr.bf16.mxu0 %v1921
    %2961 = vmatpush2.bf16.msra.mxu0 %v1920
    %2962 = vmatprep.subr.bf16.mxu0 %v1915
    %2963 = vmatpush2.bf16.msra.mxu0 %v1914
    %2964 = vmatprep.subr.bf16.mxu0 %v1909
    %2965 = vmatpush2.bf16.msra.mxu0 %v1908
    %2966 = vmatprep.subr.bf16.mxu0 %v1903
    %2967 = vmatpush2.bf16.msra.mxu0 %v1902
    %2968 = vmatprep.subr.bf16.mxu0 %v1897
    %2969 = vmatpush2.bf16.msra.mxu0 %v1896
    %2970 = vmatprep.mubr.bf16.mxu0 %v615
    %2971 = vmatmul.mubr.bf16.gmra.mxu0 %v614
    %v2972 = vpop.f32.mrf.mxu0
    %v2973 = vadd.f32 %v487, %v2972
    %v2974 = vpop.f32.mrf.mxu0
    %v2975 = vadd.f32 %v491, %v2974
    %v2976 = vpop.f32.mrf.mxu0
    %v2977 = vadd.f32 %v487, %v2976
    %v2978 = vpop.f32.mrf.mxu0
    %v2979 = vadd.f32 %v491, %v2978
    %2980 = vmatprep.mubr.bf16.mxu0 %v623
    %2981 = vmatmul.mubr.bf16.gmra.mxu0 %v622
    %v2982 = vpop.f32.mrf.mxu0
    %v2983 = vadd.f32 %v487, %v2982
    %v2984 = vpop.f32.mrf.mxu0
    %v2985 = vadd.f32 %v491, %v2984
    %v2986 = vpop.f32.mrf.mxu0
    %v2987 = vadd.f32 %v487, %v2986
    %v2988 = vpop.f32.mrf.mxu0
    %v2989 = vadd.f32 %v491, %v2988
    %2990 = vmatprep.mubr.bf16.mxu0 %v631
    %2991 = vmatmul.mubr.bf16.gmra.mxu0 %v630
    %v2992 = vpop.f32.mrf.mxu0
    %v2993 = vadd.f32 %v487, %v2992
    %v2994 = vpop.f32.mrf.mxu0
    %v2995 = vadd.f32 %v491, %v2994
    %v2996 = vpop.f32.mrf.mxu0
    %v2997 = vadd.f32 %v487, %v2996
    %v2998 = vpop.f32.mrf.mxu0
    %v2999 = vadd.f32 %v491, %v2998
    %3000 = vmatprep.mubr.bf16.mxu0 %v639
    %3001 = vmatmul.mubr.bf16.gmra.mxu0 %v638
    %v3002 = vpop.f32.mrf.mxu0
    %v3003 = vadd.f32 %v487, %v3002
    %v3004 = vpop.f32.mrf.mxu0
    %v3005 = vadd.f32 %v491, %v3004
    %v3006 = vpop.f32.mrf.mxu0
    %v3007 = vadd.f32 %v487, %v3006
    %v3008 = vpop.f32.mrf.mxu0
    %v3009 = vadd.f32 %v491, %v3008
    %3010 = vmatprep.mubr.bf16.mxu0 %v647
    %3011 = vmatmul.mubr.bf16.gmra.mxu0 %v646
    %v3012 = vpop.f32.mrf.mxu0
    %v3013 = vadd.f32 %v487, %v3012
    %v3014 = vpop.f32.mrf.mxu0
    %v3015 = vadd.f32 %v491, %v3014
    %v3016 = vpop.f32.mrf.mxu0
    %v3017 = vpop.f32.mrf.mxu0
    %3018 = vdwg.mxu0
    %3019 = vmatprep.subr.bf16.mxu0 %v1987
    %3020 = vmatpush1.bf16.msra.mxu0 %v1986
    %3021 = vmatprep.subr.bf16.mxu0 %v1981
    %3022 = vmatpush1.bf16.msra.mxu0 %v1980
    %3023 = vmatprep.subr.bf16.mxu0 %v1975
    %3024 = vmatpush1.bf16.msra.mxu0 %v1974
    %3025 = vmatprep.subr.bf16.mxu0 %v1969
    %3026 = vmatpush1.bf16.msra.mxu0 %v1968
    %3027 = vmatprep.subr.bf16.mxu0 %v1963
    %3028 = vmatpush1.bf16.msra.mxu0 %v1962
    %3029 = vmatprep.subr.bf16.mxu0 %v1957
    %3030 = vmatpush1.bf16.msra.mxu0 %v1956
    %3031 = vmatprep.subr.bf16.mxu0 %v1951
    %3032 = vmatpush1.bf16.msra.mxu0 %v1950
    %3033 = vmatprep.subr.bf16.mxu0 %v1945
    %3034 = vmatpush1.bf16.msra.mxu0 %v1944
    %3035 = vmatprep.subr.bf16.mxu0 %v2035
    %3036 = vmatpush2.bf16.msra.mxu0 %v2034
    %3037 = vmatprep.subr.bf16.mxu0 %v2029
    %3038 = vmatpush2.bf16.msra.mxu0 %v2028
    %3039 = vmatprep.subr.bf16.mxu0 %v2023
    %3040 = vmatpush2.bf16.msra.mxu0 %v2022
    %3041 = vmatprep.subr.bf16.mxu0 %v2017
    %3042 = vmatpush2.bf16.msra.mxu0 %v2016
    %3043 = vmatprep.subr.bf16.mxu0 %v2011
    %3044 = vmatpush2.bf16.msra.mxu0 %v2010
    %3045 = vmatprep.subr.bf16.mxu0 %v2005
    %3046 = vmatpush2.bf16.msra.mxu0 %v2004
    %3047 = vmatprep.subr.bf16.mxu0 %v1999
    %3048 = vmatpush2.bf16.msra.mxu0 %v1998
    %3049 = vmatprep.subr.bf16.mxu0 %v1993
    %3050 = vmatpush2.bf16.msra.mxu0 %v1992
    %3051 = vmatprep.mubr.bf16.mxu0 %v617
    %3052 = vmatmul.mubr.bf16.gmra.mxu0 %v616
    %v3053 = vpop.f32.mrf.mxu0
    %v3054 = vadd.f32 %v2973, %v3053
    %v3055 = vpop.f32.mrf.mxu0
    %v3056 = vadd.f32 %v2975, %v3055
    %v3057 = vpop.f32.mrf.mxu0
    %v3058 = vadd.f32 %v2977, %v3057
    %v3059 = vpop.f32.mrf.mxu0
    %v3060 = vadd.f32 %v2979, %v3059
    %3061 = vmatprep.mubr.bf16.mxu0 %v625
    %3062 = vmatmul.mubr.bf16.gmra.mxu0 %v624
    %v3063 = vpop.f32.mrf.mxu0
    %v3064 = vadd.f32 %v2983, %v3063
    %v3065 = vpop.f32.mrf.mxu0
    %v3066 = vadd.f32 %v2985, %v3065
    %v3067 = vpop.f32.mrf.mxu0
    %v3068 = vadd.f32 %v2987, %v3067
    %v3069 = vpop.f32.mrf.mxu0
    %v3070 = vadd.f32 %v2989, %v3069
    %3071 = vmatprep.mubr.bf16.mxu0 %v633
    %3072 = vmatmul.mubr.bf16.gmra.mxu0 %v632
    %v3073 = vpop.f32.mrf.mxu0
    %v3074 = vadd.f32 %v2993, %v3073
    %v3075 = vpop.f32.mrf.mxu0
    %v3076 = vadd.f32 %v2995, %v3075
    %v3077 = vpop.f32.mrf.mxu0
    %v3078 = vadd.f32 %v2997, %v3077
    %v3079 = vpop.f32.mrf.mxu0
    %v3080 = vadd.f32 %v2999, %v3079
    %3081 = vmatprep.mubr.bf16.mxu0 %v641
    %3082 = vmatmul.mubr.bf16.gmra.mxu0 %v640
    %v3083 = vpop.f32.mrf.mxu0
    %v3084 = vadd.f32 %v3003, %v3083
    %v3085 = vpop.f32.mrf.mxu0
    %v3086 = vadd.f32 %v3005, %v3085
    %v3087 = vpop.f32.mrf.mxu0
    %v3088 = vadd.f32 %v3007, %v3087
    %v3089 = vpop.f32.mrf.mxu0
    %v3090 = vadd.f32 %v3009, %v3089
    %3091 = vmatprep.mubr.bf16.mxu0 %v649
    %3092 = vmatmul.mubr.bf16.gmra.mxu0 %v648
    %v3093 = vpop.f32.mrf.mxu0
    %v3094 = vadd.f32 %v3013, %v3093
    %v3095 = vpop.f32.mrf.mxu0
    %v3096 = vadd.f32 %v3015, %v3095
    %v3097 = vpop.f32.mrf.mxu0
    %v3098 = vpop.f32.mrf.mxu0
    %3099 = vdwg.mxu0
    %3100 = vmatprep.subr.bf16.mxu0 %v2083
    %3101 = vmatpush1.bf16.msra.mxu0 %v2082
    %3102 = vmatprep.subr.bf16.mxu0 %v2077
    %3103 = vmatpush1.bf16.msra.mxu0 %v2076
    %3104 = vmatprep.subr.bf16.mxu0 %v2071
    %3105 = vmatpush1.bf16.msra.mxu0 %v2070
    %3106 = vmatprep.subr.bf16.mxu0 %v2065
    %3107 = vmatpush1.bf16.msra.mxu0 %v2064
    %3108 = vmatprep.subr.bf16.mxu0 %v2059
    %3109 = vmatpush1.bf16.msra.mxu0 %v2058
    %3110 = vmatprep.subr.bf16.mxu0 %v2053
    %3111 = vmatpush1.bf16.msra.mxu0 %v2052
    %3112 = vmatprep.subr.bf16.mxu0 %v2047
    %3113 = vmatpush1.bf16.msra.mxu0 %v2046
    %3114 = vmatprep.subr.bf16.mxu0 %v2041
    %3115 = vmatpush1.bf16.msra.mxu0 %v2040
    %3116 = vmatprep.subr.bf16.mxu0 %v2131
    %3117 = vmatpush2.bf16.msra.mxu0 %v2130
    %3118 = vmatprep.subr.bf16.mxu0 %v2125
    %3119 = vmatpush2.bf16.msra.mxu0 %v2124
    %3120 = vmatprep.subr.bf16.mxu0 %v2119
    %3121 = vmatpush2.bf16.msra.mxu0 %v2118
    %3122 = vmatprep.subr.bf16.mxu0 %v2113
    %3123 = vmatpush2.bf16.msra.mxu0 %v2112
    %3124 = vmatprep.subr.bf16.mxu0 %v2107
    %3125 = vmatpush2.bf16.msra.mxu0 %v2106
    %3126 = vmatprep.subr.bf16.mxu0 %v2101
    %3127 = vmatpush2.bf16.msra.mxu0 %v2100
    %3128 = vmatprep.subr.bf16.mxu0 %v2095
    %3129 = vmatpush2.bf16.msra.mxu0 %v2094
    %3130 = vmatprep.subr.bf16.mxu0 %v2089
    %3131 = vmatpush2.bf16.msra.mxu0 %v2088
    %3132 = vmatprep.mubr.bf16.mxu0 %v619
    %3133 = vmatmul.mubr.bf16.gmra.mxu0 %v618
    %v3134 = vpop.f32.mrf.mxu0
    %v3135 = vadd.f32 %v3054, %v3134
    %v3136 = vpop.f32.mrf.mxu0
    %v3137 = vadd.f32 %v3056, %v3136
    %v3138 = vpop.f32.mrf.mxu0
    %v3139 = vadd.f32 %v3058, %v3138
    %v3140 = vpop.f32.mrf.mxu0
    %v3141 = vadd.f32 %v3060, %v3140
    %3142 = vmatprep.mubr.bf16.mxu0 %v627
    %3143 = vmatmul.mubr.bf16.gmra.mxu0 %v626
    %v3144 = vpop.f32.mrf.mxu0
    %v3145 = vadd.f32 %v3064, %v3144
    %v3146 = vpop.f32.mrf.mxu0
    %v3147 = vadd.f32 %v3066, %v3146
    %v3148 = vpop.f32.mrf.mxu0
    %v3149 = vadd.f32 %v3068, %v3148
    %v3150 = vpop.f32.mrf.mxu0
    %v3151 = vadd.f32 %v3070, %v3150
    %3152 = vmatprep.mubr.bf16.mxu0 %v635
    %3153 = vmatmul.mubr.bf16.gmra.mxu0 %v634
    %v3154 = vpop.f32.mrf.mxu0
    %v3155 = vadd.f32 %v3074, %v3154
    %v3156 = vpop.f32.mrf.mxu0
    %v3157 = vadd.f32 %v3076, %v3156
    %v3158 = vpop.f32.mrf.mxu0
    %v3159 = vadd.f32 %v3078, %v3158
    %v3160 = vpop.f32.mrf.mxu0
    %v3161 = vadd.f32 %v3080, %v3160
    %3162 = vmatprep.mubr.bf16.mxu0 %v643
    %3163 = vmatmul.mubr.bf16.gmra.mxu0 %v642
    %v3164 = vpop.f32.mrf.mxu0
    %v3165 = vadd.f32 %v3084, %v3164
    %v3166 = vpop.f32.mrf.mxu0
    %v3167 = vadd.f32 %v3086, %v3166
    %v3168 = vpop.f32.mrf.mxu0
    %v3169 = vadd.f32 %v3088, %v3168
    %v3170 = vpop.f32.mrf.mxu0
    %v3171 = vadd.f32 %v3090, %v3170
    %3172 = vmatprep.mubr.bf16.mxu0 %v651
    %3173 = vmatmul.mubr.bf16.gmra.mxu0 %v650
    %v3174 = vpop.f32.mrf.mxu0
    %v3175 = vadd.f32 %v3094, %v3174
    %v3176 = vpop.f32.mrf.mxu0
    %v3177 = vadd.f32 %v3096, %v3176
    %v3178 = vpop.f32.mrf.mxu0
    %v3179 = vpop.f32.mrf.mxu0
    %3180 = vdwg.mxu0
    %3181 = vmatprep.subr.bf16.mxu0 %v2179
    %3182 = vmatpush1.bf16.msra.mxu0 %v2178
    %3183 = vmatprep.subr.bf16.mxu0 %v2173
    %3184 = vmatpush1.bf16.msra.mxu0 %v2172
    %3185 = vmatprep.subr.bf16.mxu0 %v2167
    %3186 = vmatpush1.bf16.msra.mxu0 %v2166
    %3187 = vmatprep.subr.bf16.mxu0 %v2161
    %3188 = vmatpush1.bf16.msra.mxu0 %v2160
    %3189 = vmatprep.subr.bf16.mxu0 %v2155
    %3190 = vmatpush1.bf16.msra.mxu0 %v2154
    %3191 = vmatprep.subr.bf16.mxu0 %v2149
    %3192 = vmatpush1.bf16.msra.mxu0 %v2148
    %3193 = vmatprep.subr.bf16.mxu0 %v2143
    %3194 = vmatpush1.bf16.msra.mxu0 %v2142
    %3195 = vmatprep.subr.bf16.mxu0 %v2137
    %3196 = vmatpush1.bf16.msra.mxu0 %v2136
    %3197 = vmatprep.subr.bf16.mxu0 %v2227
    %3198 = vmatpush2.bf16.msra.mxu0 %v2226
    %3199 = vmatprep.subr.bf16.mxu0 %v2221
    %3200 = vmatpush2.bf16.msra.mxu0 %v2220
    %3201 = vmatprep.subr.bf16.mxu0 %v2215
    %3202 = vmatpush2.bf16.msra.mxu0 %v2214
    %3203 = vmatprep.subr.bf16.mxu0 %v2209
    %3204 = vmatpush2.bf16.msra.mxu0 %v2208
    %3205 = vmatprep.subr.bf16.mxu0 %v2203
    %3206 = vmatpush2.bf16.msra.mxu0 %v2202
    %3207 = vmatprep.subr.bf16.mxu0 %v2197
    %3208 = vmatpush2.bf16.msra.mxu0 %v2196
    %3209 = vmatprep.subr.bf16.mxu0 %v2191
    %3210 = vmatpush2.bf16.msra.mxu0 %v2190
    %3211 = vmatprep.subr.bf16.mxu0 %v2185
    %3212 = vmatpush2.bf16.msra.mxu0 %v2184
    %3213 = vmatprep.mubr.bf16.mxu0 %v621
    %3214 = vmatmul.mubr.bf16.gmra.mxu0 %v620
    %v3215 = vpop.f32.mrf.mxu0
    %v3216 = vadd.f32 %v3135, %v3215
    %v3217 = vpop.f32.mrf.mxu0
    %v3218 = vadd.f32 %v3137, %v3217
    %v3219 = vpop.f32.mrf.mxu0
    %v3220 = vadd.f32 %v3139, %v3219
    %v3221 = vpop.f32.mrf.mxu0
    %v3222 = vadd.f32 %v3141, %v3221
    %3223 = vmatprep.mubr.bf16.mxu0 %v629
    %3224 = vmatmul.mubr.bf16.gmra.mxu0 %v628
    %v3225 = vpop.f32.mrf.mxu0
    %v3226 = vadd.f32 %v3145, %v3225
    %v3227 = vpop.f32.mrf.mxu0
    %v3228 = vadd.f32 %v3147, %v3227
    %v3229 = vpop.f32.mrf.mxu0
    %v3230 = vadd.f32 %v3149, %v3229
    %v3231 = vpop.f32.mrf.mxu0
    %v3232 = vadd.f32 %v3151, %v3231
    %3233 = vmatprep.mubr.bf16.mxu0 %v637
    %3234 = vmatmul.mubr.bf16.gmra.mxu0 %v636
    %v3235 = vpop.f32.mrf.mxu0
    %v3236 = vadd.f32 %v3155, %v3235
    %v3237 = vpop.f32.mrf.mxu0
    %v3238 = vadd.f32 %v3157, %v3237
    %v3239 = vpop.f32.mrf.mxu0
    %v3240 = vadd.f32 %v3159, %v3239
    %v3241 = vpop.f32.mrf.mxu0
    %v3242 = vadd.f32 %v3161, %v3241
    %3243 = vmatprep.mubr.bf16.mxu0 %v645
    %3244 = vmatmul.mubr.bf16.gmra.mxu0 %v644
    %v3245 = vpop.f32.mrf.mxu0
    %v3246 = vadd.f32 %v3165, %v3245
    %v3247 = vpop.f32.mrf.mxu0
    %v3248 = vadd.f32 %v3167, %v3247
    %v3249 = vpop.f32.mrf.mxu0
    %v3250 = vadd.f32 %v3169, %v3249
    %v3251 = vpop.f32.mrf.mxu0
    %v3252 = vadd.f32 %v3171, %v3251
    %3253 = vmatprep.mubr.bf16.mxu0 %v653
    %3254 = vmatmul.mubr.bf16.gmra.mxu0 %v652
    %v3255 = vpop.f32.mrf.mxu0
    %v3256 = vadd.f32 %v3175, %v3255
    %v3257 = vpop.f32.mrf.mxu0
    %v3258 = vadd.f32 %v3177, %v3257
    %v3259 = vpop.f32.mrf.mxu0
    %v3260 = vpop.f32.mrf.mxu0
    %3261 = vdwg.mxu0
    %3262 = vmatprep.subr.bf16.mxu0 %v1893
    %3263 = vmatpush1.bf16.msra.mxu0 %v1892
    %3264 = vmatprep.subr.bf16.mxu0 %v1887
    %3265 = vmatpush1.bf16.msra.mxu0 %v1886
    %3266 = vmatprep.subr.bf16.mxu0 %v1881
    %3267 = vmatpush1.bf16.msra.mxu0 %v1880
    %3268 = vmatprep.subr.bf16.mxu0 %v1875
    %3269 = vmatpush1.bf16.msra.mxu0 %v1874
    %3270 = vmatprep.subr.bf16.mxu0 %v1869
    %3271 = vmatpush1.bf16.msra.mxu0 %v1868
    %3272 = vmatprep.subr.bf16.mxu0 %v1863
    %3273 = vmatpush1.bf16.msra.mxu0 %v1862
    %3274 = vmatprep.subr.bf16.mxu0 %v1857
    %3275 = vmatpush1.bf16.msra.mxu0 %v1856
    %3276 = vmatprep.subr.bf16.mxu0 %v1851
    %3277 = vmatpush1.bf16.msra.mxu0 %v1850
    %3278 = vmatprep.subr.bf16.mxu0 %v1941
    %3279 = vmatpush2.bf16.msra.mxu0 %v1940
    %3280 = vmatprep.subr.bf16.mxu0 %v1935
    %3281 = vmatpush2.bf16.msra.mxu0 %v1934
    %3282 = vmatprep.subr.bf16.mxu0 %v1929
    %3283 = vmatpush2.bf16.msra.mxu0 %v1928
    %3284 = vmatprep.subr.bf16.mxu0 %v1923
    %3285 = vmatpush2.bf16.msra.mxu0 %v1922
    %3286 = vmatprep.subr.bf16.mxu0 %v1917
    %3287 = vmatpush2.bf16.msra.mxu0 %v1916
    %3288 = vmatprep.subr.bf16.mxu0 %v1911
    %3289 = vmatpush2.bf16.msra.mxu0 %v1910
    %3290 = vmatprep.subr.bf16.mxu0 %v1905
    %3291 = vmatpush2.bf16.msra.mxu0 %v1904
    %3292 = vmatprep.subr.bf16.mxu0 %v1899
    %3293 = vmatpush2.bf16.msra.mxu0 %v1898
    %3294 = vmatprep.mubr.bf16.mxu0 %v615
    %3295 = vmatmul.mubr.bf16.gmra.mxu0 %v614
    %v3296 = vpop.f32.mrf.mxu0
    %v3297 = vadd.f32 %v495, %v3296
    %v3298 = vpop.f32.mrf.mxu0
    %v3299 = vadd.f32 %v499, %v3298
    %v3300 = vpop.f32.mrf.mxu0
    %v3301 = vadd.f32 %v495, %v3300
    %v3302 = vpop.f32.mrf.mxu0
    %v3303 = vadd.f32 %v499, %v3302
    %3304 = vmatprep.mubr.bf16.mxu0 %v623
    %3305 = vmatmul.mubr.bf16.gmra.mxu0 %v622
    %v3306 = vpop.f32.mrf.mxu0
    %v3307 = vadd.f32 %v495, %v3306
    %v3308 = vpop.f32.mrf.mxu0
    %v3309 = vadd.f32 %v499, %v3308
    %v3310 = vpop.f32.mrf.mxu0
    %v3311 = vadd.f32 %v495, %v3310
    %v3312 = vpop.f32.mrf.mxu0
    %v3313 = vadd.f32 %v499, %v3312
    %3314 = vmatprep.mubr.bf16.mxu0 %v631
    %3315 = vmatmul.mubr.bf16.gmra.mxu0 %v630
    %v3316 = vpop.f32.mrf.mxu0
    %v3317 = vadd.f32 %v495, %v3316
    %v3318 = vpop.f32.mrf.mxu0
    %v3319 = vadd.f32 %v499, %v3318
    %v3320 = vpop.f32.mrf.mxu0
    %v3321 = vadd.f32 %v495, %v3320
    %v3322 = vpop.f32.mrf.mxu0
    %v3323 = vadd.f32 %v499, %v3322
    %3324 = vmatprep.mubr.bf16.mxu0 %v639
    %3325 = vmatmul.mubr.bf16.gmra.mxu0 %v638
    %v3326 = vpop.f32.mrf.mxu0
    %v3327 = vadd.f32 %v495, %v3326
    %v3328 = vpop.f32.mrf.mxu0
    %v3329 = vadd.f32 %v499, %v3328
    %v3330 = vpop.f32.mrf.mxu0
    %v3331 = vadd.f32 %v495, %v3330
    %v3332 = vpop.f32.mrf.mxu0
    %v3333 = vadd.f32 %v499, %v3332
    %3334 = vmatprep.mubr.bf16.mxu0 %v647
    %3335 = vmatmul.mubr.bf16.gmra.mxu0 %v646
    %v3336 = vpop.f32.mrf.mxu0
    %v3337 = vadd.f32 %v495, %v3336
    %v3338 = vpop.f32.mrf.mxu0
    %v3339 = vadd.f32 %v499, %v3338
    %v3340 = vpop.f32.mrf.mxu0
    %v3341 = vpop.f32.mrf.mxu0
    %3342 = vdwg.mxu0
    %3343 = vmatprep.subr.bf16.mxu0 %v1989
    %3344 = vmatpush1.bf16.msra.mxu0 %v1988
    %3345 = vmatprep.subr.bf16.mxu0 %v1983
    %3346 = vmatpush1.bf16.msra.mxu0 %v1982
    %3347 = vmatprep.subr.bf16.mxu0 %v1977
    %3348 = vmatpush1.bf16.msra.mxu0 %v1976
    %3349 = vmatprep.subr.bf16.mxu0 %v1971
    %3350 = vmatpush1.bf16.msra.mxu0 %v1970
    %3351 = vmatprep.subr.bf16.mxu0 %v1965
    %3352 = vmatpush1.bf16.msra.mxu0 %v1964
    %3353 = vmatprep.subr.bf16.mxu0 %v1959
    %3354 = vmatpush1.bf16.msra.mxu0 %v1958
    %3355 = vmatprep.subr.bf16.mxu0 %v1953
    %3356 = vmatpush1.bf16.msra.mxu0 %v1952
    %3357 = vmatprep.subr.bf16.mxu0 %v1947
    %3358 = vmatpush1.bf16.msra.mxu0 %v1946
    %3359 = vmatprep.subr.bf16.mxu0 %v2037
    %3360 = vmatpush2.bf16.msra.mxu0 %v2036
    %3361 = vmatprep.subr.bf16.mxu0 %v2031
    %3362 = vmatpush2.bf16.msra.mxu0 %v2030
    %3363 = vmatprep.subr.bf16.mxu0 %v2025
    %3364 = vmatpush2.bf16.msra.mxu0 %v2024
    %3365 = vmatprep.subr.bf16.mxu0 %v2019
    %3366 = vmatpush2.bf16.msra.mxu0 %v2018
    %3367 = vmatprep.subr.bf16.mxu0 %v2013
    %3368 = vmatpush2.bf16.msra.mxu0 %v2012
    %3369 = vmatprep.subr.bf16.mxu0 %v2007
    %3370 = vmatpush2.bf16.msra.mxu0 %v2006
    %3371 = vmatprep.subr.bf16.mxu0 %v2001
    %3372 = vmatpush2.bf16.msra.mxu0 %v2000
    %3373 = vmatprep.subr.bf16.mxu0 %v1995
    %3374 = vmatpush2.bf16.msra.mxu0 %v1994
    %3375 = vmatprep.mubr.bf16.mxu0 %v617
    %3376 = vmatmul.mubr.bf16.gmra.mxu0 %v616
    %v3377 = vpop.f32.mrf.mxu0
    %v3378 = vadd.f32 %v3297, %v3377
    %v3379 = vpop.f32.mrf.mxu0
    %v3380 = vadd.f32 %v3299, %v3379
    %v3381 = vpop.f32.mrf.mxu0
    %v3382 = vadd.f32 %v3301, %v3381
    %v3383 = vpop.f32.mrf.mxu0
    %v3384 = vadd.f32 %v3303, %v3383
    %3385 = vmatprep.mubr.bf16.mxu0 %v625
    %3386 = vmatmul.mubr.bf16.gmra.mxu0 %v624
    %v3387 = vpop.f32.mrf.mxu0
    %v3388 = vadd.f32 %v3307, %v3387
    %v3389 = vpop.f32.mrf.mxu0
    %v3390 = vadd.f32 %v3309, %v3389
    %v3391 = vpop.f32.mrf.mxu0
    %v3392 = vadd.f32 %v3311, %v3391
    %v3393 = vpop.f32.mrf.mxu0
    %v3394 = vadd.f32 %v3313, %v3393
    %3395 = vmatprep.mubr.bf16.mxu0 %v633
    %3396 = vmatmul.mubr.bf16.gmra.mxu0 %v632
    %v3397 = vpop.f32.mrf.mxu0
    %v3398 = vadd.f32 %v3317, %v3397
    %v3399 = vpop.f32.mrf.mxu0
    %v3400 = vadd.f32 %v3319, %v3399
    %v3401 = vpop.f32.mrf.mxu0
    %v3402 = vadd.f32 %v3321, %v3401
    %v3403 = vpop.f32.mrf.mxu0
    %v3404 = vadd.f32 %v3323, %v3403
    %3405 = vmatprep.mubr.bf16.mxu0 %v641
    %3406 = vmatmul.mubr.bf16.gmra.mxu0 %v640
    %v3407 = vpop.f32.mrf.mxu0
    %v3408 = vadd.f32 %v3327, %v3407
    %v3409 = vpop.f32.mrf.mxu0
    %v3410 = vadd.f32 %v3329, %v3409
    %v3411 = vpop.f32.mrf.mxu0
    %v3412 = vadd.f32 %v3331, %v3411
    %v3413 = vpop.f32.mrf.mxu0
    %v3414 = vadd.f32 %v3333, %v3413
    %3415 = vmatprep.mubr.bf16.mxu0 %v649
    %3416 = vmatmul.mubr.bf16.gmra.mxu0 %v648
    %v3417 = vpop.f32.mrf.mxu0
    %v3418 = vadd.f32 %v3337, %v3417
    %v3419 = vpop.f32.mrf.mxu0
    %v3420 = vadd.f32 %v3339, %v3419
    %v3421 = vpop.f32.mrf.mxu0
    %v3422 = vpop.f32.mrf.mxu0
    %3423 = vdwg.mxu0
    %3424 = vmatprep.subr.bf16.mxu0 %v2085
    %3425 = vmatpush1.bf16.msra.mxu0 %v2084
    %3426 = vmatprep.subr.bf16.mxu0 %v2079
    %3427 = vmatpush1.bf16.msra.mxu0 %v2078
    %3428 = vmatprep.subr.bf16.mxu0 %v2073
    %3429 = vmatpush1.bf16.msra.mxu0 %v2072
    %3430 = vmatprep.subr.bf16.mxu0 %v2067
    %3431 = vmatpush1.bf16.msra.mxu0 %v2066
    %3432 = vmatprep.subr.bf16.mxu0 %v2061
    %3433 = vmatpush1.bf16.msra.mxu0 %v2060
    %3434 = vmatprep.subr.bf16.mxu0 %v2055
    %3435 = vmatpush1.bf16.msra.mxu0 %v2054
    %3436 = vmatprep.subr.bf16.mxu0 %v2049
    %3437 = vmatpush1.bf16.msra.mxu0 %v2048
    %3438 = vmatprep.subr.bf16.mxu0 %v2043
    %3439 = vmatpush1.bf16.msra.mxu0 %v2042
    %3440 = vmatprep.subr.bf16.mxu0 %v2133
    %3441 = vmatpush2.bf16.msra.mxu0 %v2132
    %3442 = vmatprep.subr.bf16.mxu0 %v2127
    %3443 = vmatpush2.bf16.msra.mxu0 %v2126
    %3444 = vmatprep.subr.bf16.mxu0 %v2121
    %3445 = vmatpush2.bf16.msra.mxu0 %v2120
    %3446 = vmatprep.subr.bf16.mxu0 %v2115
    %3447 = vmatpush2.bf16.msra.mxu0 %v2114
    %3448 = vmatprep.subr.bf16.mxu0 %v2109
    %3449 = vmatpush2.bf16.msra.mxu0 %v2108
    %3450 = vmatprep.subr.bf16.mxu0 %v2103
    %3451 = vmatpush2.bf16.msra.mxu0 %v2102
    %3452 = vmatprep.subr.bf16.mxu0 %v2097
    %3453 = vmatpush2.bf16.msra.mxu0 %v2096
    %3454 = vmatprep.subr.bf16.mxu0 %v2091
    %3455 = vmatpush2.bf16.msra.mxu0 %v2090
    %3456 = vmatprep.mubr.bf16.mxu0 %v619
    %3457 = vmatmul.mubr.bf16.gmra.mxu0 %v618
    %v3458 = vpop.f32.mrf.mxu0
    %v3459 = vadd.f32 %v3378, %v3458
    %v3460 = vpop.f32.mrf.mxu0
    %v3461 = vadd.f32 %v3380, %v3460
    %v3462 = vpop.f32.mrf.mxu0
    %v3463 = vadd.f32 %v3382, %v3462
    %v3464 = vpop.f32.mrf.mxu0
    %v3465 = vadd.f32 %v3384, %v3464
    %3466 = vmatprep.mubr.bf16.mxu0 %v627
    %3467 = vmatmul.mubr.bf16.gmra.mxu0 %v626
    %v3468 = vpop.f32.mrf.mxu0
    %v3469 = vadd.f32 %v3388, %v3468
    %v3470 = vpop.f32.mrf.mxu0
    %v3471 = vadd.f32 %v3390, %v3470
    %v3472 = vpop.f32.mrf.mxu0
    %v3473 = vadd.f32 %v3392, %v3472
    %v3474 = vpop.f32.mrf.mxu0
    %v3475 = vadd.f32 %v3394, %v3474
    %3476 = vmatprep.mubr.bf16.mxu0 %v635
    %3477 = vmatmul.mubr.bf16.gmra.mxu0 %v634
    %v3478 = vpop.f32.mrf.mxu0
    %v3479 = vadd.f32 %v3398, %v3478
    %v3480 = vpop.f32.mrf.mxu0
    %v3481 = vadd.f32 %v3400, %v3480
    %v3482 = vpop.f32.mrf.mxu0
    %v3483 = vadd.f32 %v3402, %v3482
    %v3484 = vpop.f32.mrf.mxu0
    %v3485 = vadd.f32 %v3404, %v3484
    %3486 = vmatprep.mubr.bf16.mxu0 %v643
    %3487 = vmatmul.mubr.bf16.gmra.mxu0 %v642
    %v3488 = vpop.f32.mrf.mxu0
    %v3489 = vadd.f32 %v3408, %v3488
    %v3490 = vpop.f32.mrf.mxu0
    %v3491 = vadd.f32 %v3410, %v3490
    %v3492 = vpop.f32.mrf.mxu0
    %v3493 = vadd.f32 %v3412, %v3492
    %v3494 = vpop.f32.mrf.mxu0
    %v3495 = vadd.f32 %v3414, %v3494
    %3496 = vmatprep.mubr.bf16.mxu0 %v651
    %3497 = vmatmul.mubr.bf16.gmra.mxu0 %v650
    %v3498 = vpop.f32.mrf.mxu0
    %v3499 = vadd.f32 %v3418, %v3498
    %v3500 = vpop.f32.mrf.mxu0
    %v3501 = vadd.f32 %v3420, %v3500
    %v3502 = vpop.f32.mrf.mxu0
    %v3503 = vpop.f32.mrf.mxu0
    %3504 = vdwg.mxu0
    %3505 = vmatprep.subr.bf16.mxu0 %v2181
    %3506 = vmatpush1.bf16.msra.mxu0 %v2180
    %3507 = vmatprep.subr.bf16.mxu0 %v2175
    %3508 = vmatpush1.bf16.msra.mxu0 %v2174
    %3509 = vmatprep.subr.bf16.mxu0 %v2169
    %3510 = vmatpush1.bf16.msra.mxu0 %v2168
    %3511 = vmatprep.subr.bf16.mxu0 %v2163
    %3512 = vmatpush1.bf16.msra.mxu0 %v2162
    %3513 = vmatprep.subr.bf16.mxu0 %v2157
    %3514 = vmatpush1.bf16.msra.mxu0 %v2156
    %3515 = vmatprep.subr.bf16.mxu0 %v2151
    %3516 = vmatpush1.bf16.msra.mxu0 %v2150
    %3517 = vmatprep.subr.bf16.mxu0 %v2145
    %3518 = vmatpush1.bf16.msra.mxu0 %v2144
    %3519 = vmatprep.subr.bf16.mxu0 %v2139
    %3520 = vmatpush1.bf16.msra.mxu0 %v2138
    %3521 = vmatprep.subr.bf16.mxu0 %v2229
    %3522 = vmatpush2.bf16.msra.mxu0 %v2228
    %3523 = vmatprep.subr.bf16.mxu0 %v2223
    %3524 = vmatpush2.bf16.msra.mxu0 %v2222
    %3525 = vmatprep.subr.bf16.mxu0 %v2217
    %3526 = vmatpush2.bf16.msra.mxu0 %v2216
    %3527 = vmatprep.subr.bf16.mxu0 %v2211
    %3528 = vmatpush2.bf16.msra.mxu0 %v2210
    %3529 = vmatprep.subr.bf16.mxu0 %v2205
    %3530 = vmatpush2.bf16.msra.mxu0 %v2204
    %3531 = vmatprep.subr.bf16.mxu0 %v2199
    %3532 = vmatpush2.bf16.msra.mxu0 %v2198
    %3533 = vmatprep.subr.bf16.mxu0 %v2193
    %3534 = vmatpush2.bf16.msra.mxu0 %v2192
    %3535 = vmatprep.subr.bf16.mxu0 %v2187
    %3536 = vmatpush2.bf16.msra.mxu0 %v2186
    %3537 = vmatprep.mubr.bf16.mxu0 %v621
    %3538 = vmatmul.mubr.bf16.gmra.mxu0 %v620
    %v3539 = vpop.f32.mrf.mxu0
    %v3540 = vadd.f32 %v3459, %v3539
    %v3541 = vpop.f32.mrf.mxu0
    %v3542 = vadd.f32 %v3461, %v3541
    %v3543 = vpop.f32.mrf.mxu0
    %v3544 = vadd.f32 %v3463, %v3543
    %v3545 = vpop.f32.mrf.mxu0
    %v3546 = vadd.f32 %v3465, %v3545
    %3547 = vmatprep.mubr.bf16.mxu0 %v629
    %3548 = vmatmul.mubr.bf16.gmra.mxu0 %v628
    %v3549 = vpop.f32.mrf.mxu0
    %v3550 = vadd.f32 %v3469, %v3549
    %v3551 = vpop.f32.mrf.mxu0
    %v3552 = vadd.f32 %v3471, %v3551
    %v3553 = vpop.f32.mrf.mxu0
    %v3554 = vadd.f32 %v3473, %v3553
    %v3555 = vpop.f32.mrf.mxu0
    %v3556 = vadd.f32 %v3475, %v3555
    %3557 = vmatprep.mubr.bf16.mxu0 %v637
    %3558 = vmatmul.mubr.bf16.gmra.mxu0 %v636
    %v3559 = vpop.f32.mrf.mxu0
    %v3560 = vadd.f32 %v3479, %v3559
    %v3561 = vpop.f32.mrf.mxu0
    %v3562 = vadd.f32 %v3481, %v3561
    %v3563 = vpop.f32.mrf.mxu0
    %v3564 = vadd.f32 %v3483, %v3563
    %v3565 = vpop.f32.mrf.mxu0
    %v3566 = vadd.f32 %v3485, %v3565
    %3567 = vmatprep.mubr.bf16.mxu0 %v645
    %3568 = vmatmul.mubr.bf16.gmra.mxu0 %v644
    %v3569 = vpop.f32.mrf.mxu0
    %v3570 = vadd.f32 %v3489, %v3569
    %v3571 = vpop.f32.mrf.mxu0
    %v3572 = vadd.f32 %v3491, %v3571
    %v3573 = vpop.f32.mrf.mxu0
    %v3574 = vadd.f32 %v3493, %v3573
    %v3575 = vpop.f32.mrf.mxu0
    %v3576 = vadd.f32 %v3495, %v3575
    %3577 = vmatprep.mubr.bf16.mxu0 %v653
    %3578 = vmatmul.mubr.bf16.gmra.mxu0 %v652
    %v3579 = vpop.f32.mrf.mxu0
    %v3580 = vadd.f32 %v3499, %v3579
    %v3581 = vpop.f32.mrf.mxu0
    %v3582 = vadd.f32 %v3501, %v3581
    %v3583 = vpop.f32.mrf.mxu0
    %v3584 = vpop.f32.mrf.mxu0
    %3585 = vdwg.mxu0
    %v3586 = vtanh.pop %v2892
    %v3587 = vtanh.pop %v2894
    %v3588 = vtanh.pop %v3216
    %v3589 = vtanh.pop %v3218
    %v3590 = vtanh.pop %v3540
    %v3591 = vtanh.pop %v3542
    %v3592 = vtanh.pop %v2896
    %v3593 = vtanh.pop %v2898
    %v3594 = vtanh.pop %v3220
    %v3595 = vtanh.pop %v3222
    %v3596 = vtanh.pop %v3544
    %v3597 = vtanh.pop %v3546
    %v3598 = vtanh.pop %v2902
    %v3599 = vtanh.pop %v2904
    %v3600 = vtanh.pop %v3226
    %v3601 = vtanh.pop %v3228
    %v3602 = vtanh.pop %v3550
    %v3603 = vtanh.pop %v3552
    %v3604 = vtanh.pop %v2906
    %v3605 = vtanh.pop %v2908
    %v3606 = vtanh.pop %v3230
    %v3607 = vtanh.pop %v3232
    %v3608 = vtanh.pop %v3554
    %v3609 = vtanh.pop %v3556
    %v3610 = vtanh.pop %v2912
    %v3611 = vtanh.pop %v2914
    %v3612 = vtanh.pop %v3236
    %v3613 = vtanh.pop %v3238
    %v3614 = vtanh.pop %v3560
    %v3615 = vtanh.pop %v3562
    %v3616 = vtanh.pop %v2916
    %v3617 = vtanh.pop %v2918
    %v3618 = vtanh.pop %v3240
    %v3619 = vtanh.pop %v3242
    %v3620 = vtanh.pop %v3564
    %v3621 = vtanh.pop %v3566
    %v3622 = vtanh.pop %v2922
    %v3623 = vtanh.pop %v2924
    %v3624 = vtanh.pop %v3246
    %v3625 = vtanh.pop %v3248
    %v3626 = vtanh.pop %v3570
    %v3627 = vtanh.pop %v3572
    %v3628 = vtanh.pop %v2926
    %v3629 = vtanh.pop %v2928
    %v3630 = vtanh.pop %v3250
    %v3631 = vtanh.pop %v3252
    %v3632 = vtanh.pop %v3574
    %v3633 = vtanh.pop %v3576
    %v3634 = vtanh.pop %v2932
    %v3635 = vtanh.pop %v2934
    %v3636 = vtanh.pop %v3256
    %v3637 = vtanh.pop %v3258
    %v3638 = vtanh.pop %v3580
    %v3639 = vtanh.pop %v3582
    %v3640 = vpack.c.bf16 %v3592, %v3586
    %v3641 = vpack.c.bf16 %v3593, %v3587
    %v3642 = vpack.c.bf16 %v3594, %v3588
    %v3643 = vpack.c.bf16 %v3595, %v3589
    %v3644 = vpack.c.bf16 %v3596, %v3590
    %v3645 = vpack.c.bf16 %v3597, %v3591
    %v3646 = vpack.c.bf16 %v3604, %v3598
    %v3647 = vpack.c.bf16 %v3605, %v3599
    %v3648 = vpack.c.bf16 %v3606, %v3600
    %v3649 = vpack.c.bf16 %v3607, %v3601
    %v3650 = vpack.c.bf16 %v3608, %v3602
    %v3651 = vpack.c.bf16 %v3609, %v3603
    %v3652 = vpack.c.bf16 %v3616, %v3610
    %v3653 = vpack.c.bf16 %v3617, %v3611
    %v3654 = vpack.c.bf16 %v3618, %v3612
    %v3655 = vpack.c.bf16 %v3619, %v3613
    %v3656 = vpack.c.bf16 %v3620, %v3614
    %v3657 = vpack.c.bf16 %v3621, %v3615
    %v3658 = vpack.c.bf16 %v3628, %v3622
    %v3659 = vpack.c.bf16 %v3629, %v3623
    %v3660 = vpack.c.bf16 %v3630, %v3624
    %v3661 = vpack.c.bf16 %v3631, %v3625
    %v3662 = vpack.c.bf16 %v3632, %v3626
    %v3663 = vpack.c.bf16 %v3633, %v3627
    %v3664 = vpack.c.bf16 %v3634, %v3634
    %v3665 = vpack.c.bf16 %v3635, %v3635
    %v3666 = vpack.c.bf16 %v3636, %v3636
    %v3667 = vpack.c.bf16 %v3637, %v3637
    %v3668 = vpack.c.bf16 %v3638, %v3638
    %v3669 = vpack.c.bf16 %v3639, %v3639
    %v3700 = vunpack.c.l.b16 %v3640
    %v3701 = vunpack.c.l.b16 %v3641
    %v3702 = vunpack.c.l.b16 %v3642
    %v3703 = vunpack.c.l.b16 %v3643
    %v3704 = vunpack.c.l.b16 %v3644
    %v3705 = vunpack.c.l.b16 %v3645
    %v3706 = vunpack.c.h.b16 %v3640
    %v3707 = vunpack.c.h.b16 %v3641
    %v3708 = vunpack.c.h.b16 %v3642
    %v3709 = vunpack.c.h.b16 %v3643
    %v3710 = vunpack.c.h.b16 %v3644
    %v3711 = vunpack.c.h.b16 %v3645
    %v3712 = vunpack.c.l.b16 %v3646
    %v3713 = vunpack.c.l.b16 %v3647
    %v3714 = vunpack.c.l.b16 %v3648
    %v3715 = vunpack.c.l.b16 %v3649
    %v3716 = vunpack.c.l.b16 %v3650
    %v3717 = vunpack.c.l.b16 %v3651
    %v3718 = vunpack.c.h.b16 %v3646
    %v3719 = vunpack.c.h.b16 %v3647
    %v3720 = vunpack.c.h.b16 %v3648
    %v3721 = vunpack.c.h.b16 %v3649
    %v3722 = vunpack.c.h.b16 %v3650
    %v3723 = vunpack.c.h.b16 %v3651
    %v3724 = vunpack.c.l.b16 %v3652
    %v3725 = vunpack.c.l.b16 %v3653
    %v3726 = vunpack.c.l.b16 %v3654
    %v3727 = vunpack.c.l.b16 %v3655
    %v3728 = vunpack.c.l.b16 %v3656
    %v3729 = vunpack.c.l.b16 %v3657
    %v3730 = vunpack.c.h.b16 %v3652
    %v3731 = vunpack.c.h.b16 %v3653
    %v3732 = vunpack.c.h.b16 %v3654
    %v3733 = vunpack.c.h.b16 %v3655
    %v3734 = vunpack.c.h.b16 %v3656
    %v3735 = vunpack.c.h.b16 %v3657
    %v3736 = vunpack.c.l.b16 %v3658
    %v3737 = vunpack.c.l.b16 %v3659
    %v3738 = vunpack.c.l.b16 %v3660
    %v3739 = vunpack.c.l.b16 %v3661
    %v3740 = vunpack.c.l.b16 %v3662
    %v3741 = vunpack.c.l.b16 %v3663
    %v3742 = vunpack.c.h.b16 %v3658
    %v3743 = vunpack.c.h.b16 %v3659
    %v3744 = vunpack.c.h.b16 %v3660
    %v3745 = vunpack.c.h.b16 %v3661
    %v3746 = vunpack.c.h.b16 %v3662
    %v3747 = vunpack.c.h.b16 %v3663
    %v3748 = vunpack.c.l.b16 %v3664
    %v3749 = vunpack.c.l.b16 %v3665
    %v3750 = vunpack.c.l.b16 %v3666
    %v3751 = vunpack.c.l.b16 %v3667
    %v3752 = vunpack.c.l.b16 %v3668
    %v3753 = vunpack.c.l.b16 %v3669
    %v3754 = vpack.c.b16 %v3701, %v3700
    %v3755 = vpack.c.b16 %v3703, %v3702
    %v3756 = vpack.c.b16 %v3705, %v3704
    %v3757 = vpack.c.b16 %v3707, %v3706
    %v3758 = vpack.c.b16 %v3709, %v3708
    %v3759 = vpack.c.b16 %v3711, %v3710
    %v3760 = vpack.c.b16 %v3713, %v3712
    %v3761 = vpack.c.b16 %v3715, %v3714
    %v3762 = vpack.c.b16 %v3717, %v3716
    %v3763 = vpack.c.b16 %v3719, %v3718
    %v3764 = vpack.c.b16 %v3721, %v3720
    %v3765 = vpack.c.b16 %v3723, %v3722
    %v3766 = vpack.c.b16 %v3725, %v3724
    %v3767 = vpack.c.b16 %v3727, %v3726
    %v3768 = vpack.c.b16 %v3729, %v3728
    %v3769 = vpack.c.b16 %v3731, %v3730
    %v3770 = vpack.c.b16 %v3733, %v3732
    %v3771 = vpack.c.b16 %v3735, %v3734
    %v3772 = vpack.c.b16 %v3737, %v3736
    %v3773 = vpack.c.b16 %v3739, %v3738
    %v3774 = vpack.c.b16 %v3741, %v3740
    %v3775 = vpack.c.b16 %v3743, %v3742
    %v3776 = vpack.c.b16 %v3745, %v3744
    %v3777 = vpack.c.b16 %v3747, %v3746
    %v3778 = vpack.c.b16 %v3749, %v3748
    %v3779 = vpack.c.b16 %v3751, %v3750
    %v3780 = vpack.c.b16 %v3753, %v3752
    %3808 = vst [vmem:[#allocation8] sm:$0xff] %v3754
    %3809 = vst [vmem:[#allocation8 + $0x8] sm:$0xff] %v3755
    %3810 = vst [vmem:[#allocation8 + $0x10] sm:$0xff] %v3756
    %3811 = vst [vmem:[#allocation8 + $0x18] sm:$0xff] %v3757
    %3812 = vst [vmem:[#allocation8 + $0x20] sm:$0xff] %v3758
    %3813 = vst [vmem:[#allocation8 + $0x28] sm:$0xff] %v3759
    %3814 = vst [vmem:[#allocation8 + $0x30] sm:$0xff] %v3760
    %3815 = vst [vmem:[#allocation8 + $0x38] sm:$0xff] %v3761
    %3816 = vst [vmem:[#allocation8 + $0x40] sm:$0xff] %v3762
    %3817 = vst [vmem:[#allocation8 + $0x48] sm:$0xff] %v3763
    %3818 = vst [vmem:[#allocation8 + $0x50] sm:$0xff] %v3764
    %3819 = vst [vmem:[#allocation8 + $0x58] sm:$0xff] %v3765
    %3820 = vst [vmem:[#allocation8 + $0x60] sm:$0xff] %v3766
    %3821 = vst [vmem:[#allocation8 + $0x68] sm:$0xff] %v3767
    %3822 = vst [vmem:[#allocation8 + $0x70] sm:$0xff] %v3768
    %3823 = vst [vmem:[#allocation8 + $0x78] sm:$0xff] %v3769
    %3824 = vst [vmem:[#allocation8 + $0x80] sm:$0xff] %v3770
    %3825 = vst [vmem:[#allocation8 + $0x88] sm:$0xff] %v3771
    %3826 = vst [vmem:[#allocation8 + $0x90] sm:$0xff] %v3772
    %3827 = vst [vmem:[#allocation8 + $0x98] sm:$0xff] %v3773
    %3828 = vst [vmem:[#allocation8 + $0xa0] sm:$0xff] %v3774
    %3829 = vst [vmem:[#allocation8 + $0xa8] sm:$0xff] %v3775
    %3830 = vst [vmem:[#allocation8 + $0xb0] sm:$0xff] %v3776
    %3831 = vst [vmem:[#allocation8 + $0xb8] sm:$0xff] %v3777
    %3832 = vst [vmem:[#allocation8 + $0xc0] sm:$0xff] %v3778
    %3833 = vst [vmem:[#allocation8 + $0xc8] sm:$0xff] %v3779
    %3834 = vst [vmem:[#allocation8 + $0xd0] sm:$0xff] %v3780
    // Predicated region
    $region26: #{tpu_custom_call.1} parent=1 // pred_check
      _
    $region27: #{tpu_custom_call.1} parent=1 // pred_check_branch
      %3836 = sbr.rel (0) target = $region29
    $region28: #{tpu_custom_call.1} parent=1 // pred_region
      %s3838 = ssub.s32 3456, 3456
      %3839 = vsyncadd [#allocation4], %s3838
      %s3840 = sshll.u32 [#allocation8], 4
      %s3841 = int_to_ptr.vmem [resolvable:$true] %s3840
      %3846 = dma.vmem_to_hbm [thread:$0]  %s3841, 3456, %s3, [#allocation4], 384, 384, 24
    $region29: #{tpu_custom_call.1} parent=1 // pred_fallthru
      _
    // Predicated region
    $region30: #{tpu_custom_call.1} parent=1 // pred_check
      _
    $region31: #{tpu_custom_call.1} parent=1 // pred_check_branch
      %3848 = sbr.rel (0) target = $region33
    $region32: #{tpu_custom_call.1} parent=1 // pred_region
      %3849 = dma.done [#allocation4], 3456
    $region33: #{tpu_custom_call.1} parent=1 // pred_fallthru
      _
    %3850 = vsyncpa [#allocation3], 1
    %3851 = vsyncpa [#allocation6], 1
    %3852 = vsyncpa [#allocation4], 1

</llo_original>
